<compile_context>
chip_gen: v7x
topology: tpu7x:2x2x1
jax: 0.10.0
libtpu: 0.0.40
codegen_flags: <defaults>
</compile_context>

<pallas_src>
import functools

import numpy as np
import jax
import jax.numpy as jnp
from jax import lax
from jax.experimental import pallas as pl
from jax.experimental.pallas import tpu as pltpu

_EPS = 1e-7
_LANE = 128

# dot_general dimension numbers: contract dim d of BOTH operands, no batching.
_CONTRACT_0 = (((0,), (0,)), ((), ()))   # A^T @ B  (transpose folded into MXU fetch)
_CONTRACT_1 = (((1,), (1,)), ((), ()))   # A @ B^T


def _round_up(x, m):
    return ((x + m - 1) // m) * m


def _dot(a, b):
    return jnp.dot(a, b, preferred_element_type=jnp.float32)


def _dot_t(a, b):
    """A^T @ B without materializing A^T."""
    return lax.dot_general(a, b, _CONTRACT_0, preferred_element_type=jnp.float32)


def djconv_kernel(h_ref, u_ref, i_ref, w_ref, b_ref, uo_ref, io_ref, *,
                  h_is_binary):
    """Both DJconv sides in one kernel; H lands in VMEM exactly once."""
    H = h_ref[...]          # (n_u, n_i) f32 incidence matrix
    U = u_ref[...]          # (n_u, Cp)
    I = i_ref[...]          # (n_i, Cp)
    W = w_ref[...]          # (Cp, Cp)
    b = b_ref[...]          # (1, Cp)

    n_u = H.shape[0]

    # Gram matrices -- the dominant MXU work.  bf16 is exact for a 0/1 H
    # (products are 0/1, accumulation is f32) and runs the MXU at full rate.
    Hm = H.astype(jnp.bfloat16) if h_is_binary else H
    gram_i = lax.dot_general(Hm, Hm, _CONTRACT_0,
                             preferred_element_type=jnp.float32)   # H^T H (n_i, n_i)
    gram_u = lax.dot_general(Hm, Hm, _CONTRACT_1,
                             preferred_element_type=jnp.float32)   # H H^T (n_u, n_u)

    ones_u = jnp.ones((n_u, 1), jnp.float32)
    rowsum_h = jnp.sum(H, axis=1, keepdims=True)     # (n_u, 1) = H 1
    colsum_h = _dot_t(H, ones_u)                     # (n_i, 1) = H^T 1

    # ----------------------------------------------------------------- users
    # Hu = [H, A], A = H @ gram_i (never materialized):
    #   A^T y = gram_i (H^T y),  A t = H (gram_i t),
    #   rowsum(A) = H (gram_i 1),  colsum(A) = gram_i (H^T 1).
    rowsum_a_u = _dot(H, jnp.sum(gram_i, axis=1, keepdims=True))   # (n_u, 1)
    colsum_a_u = _dot(gram_i, colsum_h)                            # (n_i, 1)

    dv_u = lax.rsqrt(rowsum_h + rowsum_a_u + _EPS)    # Dv diagonal
    deh_u = 1.0 / (colsum_h + _EPS)                   # De^2 diag, H block
    dea_u = 1.0 / (colsum_a_u + _EPS)                 # De^2 diag, A block

    Yu = dv_u * U                                     # Dv X
    s_u = _dot_t(H, Yu)                               # H^T Dv X           (n_i, Cp)
    r1_u = _dot(H, deh_u * s_u)                       # H De^2 H^T Dv X
    t_u = dea_u * _dot(gram_i, s_u)                   # De^2 A^T Dv X
    r2_u = _dot(H, _dot(gram_i, t_u))                 # A De^2 A^T Dv X
    M_u = dv_u * (r1_u + r2_u) + U
    uo_ref[...] = _dot(M_u, W) + b

    # ----------------------------------------------------------------- items
    # Same math with G = H^T (never materialized):
    #   G^T y = H y,  G t = H^T t,  G^T G = gram_u,  A_i = G gram_u.
    rowsum_a_i = _dot_t(H, jnp.sum(gram_u, axis=1, keepdims=True))  # (n_i, 1)
    colsum_a_i = _dot(gram_u, rowsum_h)                             # (n_u, 1)

    dv_i = lax.rsqrt(colsum_h + rowsum_a_i + _EPS)     # rowsum(G) = colsum(H)
    deh_i = 1.0 / (rowsum_h + _EPS)                    # colsum(G) = rowsum(H)
    dea_i = 1.0 / (colsum_a_i + _EPS)

    Yi = dv_i * I
    s_i = _dot(H, Yi)                                  # G^T Dv X           (n_u, Cp)
    r1_i = _dot_t(H, deh_i * s_i)                      # G De^2 G^T Dv X
    t_i = dea_i * _dot(gram_u, s_i)
    r2_i = _dot_t(H, _dot(gram_u, t_i))
    M_i = dv_i * (r1_i + r2_i) + I
    io_ref[...] = _dot(M_i, W) + b


def djconv_forward(H, U, I, weight, bias, *, h_is_binary=True):
    """Equivalent of DJconv.forward(H, U, I) for a dense incidence matrix H."""
    H = H.astype(jnp.float32)
    U = U.astype(jnp.float32)
    I = I.astype(jnp.float32)
    weight = weight.astype(jnp.float32)
    bias = bias.astype(jnp.float32)

    n_u, n_i = H.shape
    c_in, c_out = weight.shape

    # Lane-pad the tiny channel dims to a full 128-lane slab: every in-kernel
    # store becomes an unmasked lane-dense vst and the projection matmul does
    # not waste >95% of MXU lanes.  Zero-padding is exact (propagation is
    # linear in X; padded W rows/cols are zero); result is sliced back below.
    c_pad = _round_up(max(c_in, c_out, 1), _LANE)
    U_p = jnp.pad(U, ((0, 0), (0, c_pad - c_in)))
    I_p = jnp.pad(I, ((0, 0), (0, c_pad - c_in)))
    W_p = jnp.pad(weight, ((0, c_pad - c_in), (0, c_pad - c_out)))
    b_p = jnp.pad(bias, (0, c_pad - c_out)).reshape(1, c_pad)

    # Advisory cost estimate for XLA's scheduler.
    def mm(m, k, n):
        return 2 * m * k * n
    flops = (mm(n_i, n_u, n_i) + mm(n_u, n_i, n_u)                    # Gram matrices
             + 3 * mm(n_u, n_i, c_pad) + 2 * mm(n_i, n_i, c_pad)      # users propagation
             + 3 * mm(n_i, n_u, c_pad) + 2 * mm(n_u, n_u, c_pad)      # items propagation
             + mm(n_u, c_pad, c_pad) + mm(n_i, c_pad, c_pad))         # projections
    bytes_accessed = 4 * (H.size + U_p.size + I_p.size + W_p.size + b_p.size
                          + n_u * c_pad + n_i * c_pad)
    cost = pl.CostEstimate(flops=int(flops),
                           transcendentals=int(3 * (n_u + n_i)),
                           bytes_accessed=int(bytes_accessed))

    vmem_spec = pl.BlockSpec(memory_space=pltpu.MemorySpace.VMEM)
    u_out_p, i_out_p = pl.pallas_call(
        functools.partial(djconv_kernel, h_is_binary=h_is_binary),
        out_shape=(jax.ShapeDtypeStruct((n_u, c_pad), jnp.float32),
                   jax.ShapeDtypeStruct((n_i, c_pad), jnp.float32)),
        in_specs=[vmem_spec] * 5,
        out_specs=(vmem_spec, vmem_spec),
        compiler_params=pltpu.CompilerParams(
            # Above the 16/32 MiB default scoped limit, below v7x's 64 MiB
            # physical VMEM per TensorCore.
            vmem_limit_bytes=48 * 1024 * 1024),
        cost_estimate=cost,
    )(H, U_p, I_p, W_p, b_p)

    return u_out_p[:, :c_out], i_out_p[:, :c_out]


# ---------------------------------------------------------------------------
# Pure-numpy reference (mirrors the PyTorch dense-path math literally).
# ---------------------------------------------------------------------------
def _ref_side(H, X, W, b):
    H = np.asarray(H, np.float32)
    X = np.asarray(X, np.float32)
    W = np.asarray(W, np.float32)
    b = np.asarray(b, np.float32)
    HTH = H.T @ H
    Hu = np.concatenate([H, H @ HTH], axis=1)
    row_sum = Hu.sum(axis=1)
    col_sum = Hu.sum(axis=0)
    Dv = np.diag(np.power(row_sum + 1e-7, -0.5))
    De = np.diag(np.power(col_sum + 1e-7, -0.5))
    M = Dv @ Hu @ De @ De @ Hu.T @ Dv @ X + X
    return M @ W + b


if __name__ == "__main__":
    n_users, n_items = 16, 8
    c_in, c_out = 4, 6

    key = jax.random.PRNGKey(0)
    k_h, k_u, k_i, k_w, k_b = jax.random.split(key, 5)

    # Binary incidence matrix (user-item hypergraph) and dense features.
    H = (jax.random.uniform(k_h, (n_users, n_items)) < 0.4).astype(jnp.float32)
    U = jax.random.normal(k_u, (n_users, c_in), dtype=jnp.float32)
    I = jax.random.normal(k_i, (n_items, c_in), dtype=jnp.float32)

    # Parameters: xavier_uniform_-style weight (in_channels, out_channels);
    # bias initialized deterministically (reference leaves it uninitialized).
    bound = float(np.sqrt(6.0 / (c_in + c_out)))
    weight = jax.random.uniform(k_w, (c_in, c_out), minval=-bound, maxval=bound,
                                dtype=jnp.float32)
    bias = 0.1 * jax.random.normal(k_b, (c_out,), dtype=jnp.float32)

    U_out, I_out = djconv_forward(H, U, I, weight, bias)
    U_out = jax.block_until_ready(U_out)
    I_out = jax.block_until_ready(I_out)

    # Verify against the literal reference formulation.
    U_ref = _ref_side(np.asarray(H), np.asarray(U), np.asarray(weight),
                      np.asarray(bias))
    I_ref = _ref_side(np.asarray(H).T, np.asarray(I), np.asarray(weight),
                      np.asarray(bias))
    np.testing.assert_allclose(np.asarray(U_out), U_ref, rtol=1e-4, atol=1e-4)
    np.testing.assert_allclose(np.asarray(I_out), I_ref, rtol=1e-4, atol=1e-4)

    print("KERNEL_OK")
</pallas_src>

<mosaic_0001>
module attributes {stable_mosaic.version = 11 : i64} {
  func.func @djconv_kernel(%arg0: memref<16x8xf32, #tpu.memory_space<vmem>>, %arg1: memref<16x128xf32, #tpu.memory_space<vmem>>, %arg2: memref<8x128xf32, #tpu.memory_space<vmem>>, %arg3: memref<128x128xf32, #tpu.memory_space<vmem>>, %arg4: memref<1x128xf32, #tpu.memory_space<vmem>>, %arg5: memref<16x128xf32, #tpu.memory_space<vmem>>, %arg6: memref<8x128xf32, #tpu.memory_space<vmem>>) attributes {dimension_semantics = [], scalar_prefetch = 0 : i64, scratch_operands = 0 : i64, tpu.core_type = #tpu.core_type<tc>} {
    %c0 = arith.constant 0 : index
    %c0_0 = arith.constant 0 : index
    %0 = vector.load %arg0[%c0, %c0_0] : memref<16x8xf32, #tpu.memory_space<vmem>>, vector<16x8xf32>
    %c0_1 = arith.constant 0 : index
    %c0_2 = arith.constant 0 : index
    %1 = vector.load %arg1[%c0_1, %c0_2] : memref<16x128xf32, #tpu.memory_space<vmem>>, vector<16x128xf32>
    %c0_3 = arith.constant 0 : index
    %c0_4 = arith.constant 0 : index
    %2 = vector.load %arg2[%c0_3, %c0_4] : memref<8x128xf32, #tpu.memory_space<vmem>>, vector<8x128xf32>
    %c0_5 = arith.constant 0 : index
    %c0_6 = arith.constant 0 : index
    %3 = vector.load %arg3[%c0_5, %c0_6] : memref<128x128xf32, #tpu.memory_space<vmem>>, vector<128x128xf32>
    %c0_7 = arith.constant 0 : index
    %c0_8 = arith.constant 0 : index
    %4 = vector.load %arg4[%c0_7, %c0_8] : memref<1x128xf32, #tpu.memory_space<vmem>>, vector<1x128xf32>
    %5 = arith.truncf %0 : vector<16x8xf32> to vector<16x8xbf16>
    %cst = arith.constant dense<0.000000e+00> : vector<8x8xf32>
    %6 = tpu.matmul %5, %5, %cst {dimension_numbers = #tpu.dot_dimension_numbers<[0], [0], [1], [1], [0, 1, 1, 1], [], []>} : vector<16x8xbf16>, vector<16x8xbf16>, vector<8x8xf32> -> vector<8x8xf32>
    %cst_9 = arith.constant dense<0.000000e+00> : vector<16x16xf32>
    %7 = tpu.matmul %5, %5, %cst_9 {dimension_numbers = #tpu.dot_dimension_numbers<[1], [1], [0], [0], [0, 0, 1, 0], [], []>} : vector<16x8xbf16>, vector<16x8xbf16>, vector<16x16xf32> -> vector<16x16xf32>
    %cst_10 = arith.constant 1.000000e+00 : f32
    %8 = vector.broadcast %cst_10 : f32 to vector<16x1xf32>
    %cst_11 = arith.constant dense<0.000000e+00> : vector<16xf32>
    %9 = vector.multi_reduction <add>, %0, %cst_11 [1] : vector<16x8xf32> to vector<16xf32>
    %10 = vector.shape_cast %9 : vector<16xf32> to vector<16x1xf32>
    %cst_12 = arith.constant dense<0.000000e+00> : vector<8x1xf32>
    %11 = tpu.matmul %0, %8, %cst_12 {dimension_numbers = #tpu.dot_dimension_numbers<[0], [0], [1], [1], [0, 1, 1, 1], [], []>} : vector<16x8xf32>, vector<16x1xf32>, vector<8x1xf32> -> vector<8x1xf32>
    %cst_13 = arith.constant dense<0.000000e+00> : vector<8xf32>
    %12 = vector.multi_reduction <add>, %6, %cst_13 [1] : vector<8x8xf32> to vector<8xf32>
    %13 = vector.shape_cast %12 : vector<8xf32> to vector<8x1xf32>
    %cst_14 = arith.constant dense<0.000000e+00> : vector<16x1xf32>
    %14 = tpu.matmul %0, %13, %cst_14 {dimension_numbers = #tpu.dot_dimension_numbers<[1], [0], [0], [1], [0, 0, 1, 1], [], []>} : vector<16x8xf32>, vector<8x1xf32>, vector<16x1xf32> -> vector<16x1xf32>
    %cst_15 = arith.constant dense<0.000000e+00> : vector<8x1xf32>
    %15 = tpu.matmul %6, %11, %cst_15 {dimension_numbers = #tpu.dot_dimension_numbers<[1], [0], [0], [1], [0, 0, 1, 1], [], []>} : vector<8x8xf32>, vector<8x1xf32>, vector<8x1xf32> -> vector<8x1xf32>
    %16 = arith.addf %10, %14 : vector<16x1xf32>
    %cst_16 = arith.constant 1.000000e-07 : f32
    %17 = vector.broadcast %cst_16 : f32 to vector<16x1xf32>
    %18 = arith.addf %16, %17 : vector<16x1xf32>
    %19 = math.rsqrt %18 : vector<16x1xf32>
    %cst_17 = arith.constant 1.000000e-07 : f32
    %20 = vector.broadcast %cst_17 : f32 to vector<8x1xf32>
    %21 = arith.addf %11, %20 : vector<8x1xf32>
    %cst_18 = arith.constant 1.000000e+00 : f32
    %22 = vector.broadcast %cst_18 : f32 to vector<8x1xf32>
    %23 = arith.divf %22, %21 : vector<8x1xf32>
    %cst_19 = arith.constant 1.000000e-07 : f32
    %24 = vector.broadcast %cst_19 : f32 to vector<8x1xf32>
    %25 = arith.addf %15, %24 : vector<8x1xf32>
    %cst_20 = arith.constant 1.000000e+00 : f32
    %26 = vector.broadcast %cst_20 : f32 to vector<8x1xf32>
    %27 = arith.divf %26, %25 : vector<8x1xf32>
    %28 = vector.broadcast %19 : vector<16x1xf32> to vector<16x128xf32>
    %29 = arith.mulf %28, %1 : vector<16x128xf32>
    %cst_21 = arith.constant dense<0.000000e+00> : vector<8x128xf32>
    %30 = tpu.matmul %0, %29, %cst_21 {dimension_numbers = #tpu.dot_dimension_numbers<[0], [0], [1], [1], [0, 1, 1, 1], [], []>} : vector<16x8xf32>, vector<16x128xf32>, vector<8x128xf32> -> vector<8x128xf32>
    %31 = vector.broadcast %23 : vector<8x1xf32> to vector<8x128xf32>
    %32 = arith.mulf %31, %30 : vector<8x128xf32>
    %cst_22 = arith.constant dense<0.000000e+00> : vector<16x128xf32>
    %33 = tpu.matmul %0, %32, %cst_22 {dimension_numbers = #tpu.dot_dimension_numbers<[1], [0], [0], [1], [0, 0, 1, 1], [], []>} : vector<16x8xf32>, vector<8x128xf32>, vector<16x128xf32> -> vector<16x128xf32>
    %cst_23 = arith.constant dense<0.000000e+00> : vector<8x128xf32>
    %34 = tpu.matmul %6, %30, %cst_23 {dimension_numbers = #tpu.dot_dimension_numbers<[1], [0], [0], [1], [0, 0, 1, 1], [], []>} : vector<8x8xf32>, vector<8x128xf32>, vector<8x128xf32> -> vector<8x128xf32>
    %35 = vector.broadcast %27 : vector<8x1xf32> to vector<8x128xf32>
    %36 = arith.mulf %35, %34 : vector<8x128xf32>
    %cst_24 = arith.constant dense<0.000000e+00> : vector<8x128xf32>
    %37 = tpu.matmul %6, %36, %cst_24 {dimension_numbers = #tpu.dot_dimension_numbers<[1], [0], [0], [1], [0, 0, 1, 1], [], []>} : vector<8x8xf32>, vector<8x128xf32>, vector<8x128xf32> -> vector<8x128xf32>
    %cst_25 = arith.constant dense<0.000000e+00> : vector<16x128xf32>
    %38 = tpu.matmul %0, %37, %cst_25 {dimension_numbers = #tpu.dot_dimension_numbers<[1], [0], [0], [1], [0, 0, 1, 1], [], []>} : vector<16x8xf32>, vector<8x128xf32>, vector<16x128xf32> -> vector<16x128xf32>
    %39 = arith.addf %33, %38 : vector<16x128xf32>
    %40 = vector.broadcast %19 : vector<16x1xf32> to vector<16x128xf32>
    %41 = arith.mulf %40, %39 : vector<16x128xf32>
    %42 = arith.addf %41, %1 : vector<16x128xf32>
    %cst_26 = arith.constant dense<0.000000e+00> : vector<16x128xf32>
    %43 = tpu.matmul %42, %3, %cst_26 {dimension_numbers = #tpu.dot_dimension_numbers<[1], [0], [0], [1], [0, 0, 1, 1], [], []>} : vector<16x128xf32>, vector<128x128xf32>, vector<16x128xf32> -> vector<16x128xf32>
    %44 = vector.broadcast %4 : vector<1x128xf32> to vector<16x128xf32>
    %45 = arith.addf %43, %44 : vector<16x128xf32>
    %c0_27 = arith.constant 0 : index
    %c0_28 = arith.constant 0 : index
    %46 = vector.load %arg5[%c0_27, %c0_28] : memref<16x128xf32, #tpu.memory_space<vmem>>, vector<16x128xf32>
    tpu.vector_store %arg5[%c0_27, %c0_28], %45 {strides = array<i32>} : memref<16x128xf32, #tpu.memory_space<vmem>>, vector<16x128xf32>,
    %cst_29 = arith.constant dense<0.000000e+00> : vector<16xf32>
    %47 = vector.multi_reduction <add>, %7, %cst_29 [1] : vector<16x16xf32> to vector<16xf32>
    %48 = vector.shape_cast %47 : vector<16xf32> to vector<16x1xf32>
    %cst_30 = arith.constant dense<0.000000e+00> : vector<8x1xf32>
    %49 = tpu.matmul %0, %48, %cst_30 {dimension_numbers = #tpu.dot_dimension_numbers<[0], [0], [1], [1], [0, 1, 1, 1], [], []>} : vector<16x8xf32>, vector<16x1xf32>, vector<8x1xf32> -> vector<8x1xf32>
    %cst_31 = arith.constant dense<0.000000e+00> : vector<16x1xf32>
    %50 = tpu.matmul %7, %10, %cst_31 {dimension_numbers = #tpu.dot_dimension_numbers<[1], [0], [0], [1], [0, 0, 1, 1], [], []>} : vector<16x16xf32>, vector<16x1xf32>, vector<16x1xf32> -> vector<16x1xf32>
    %51 = arith.addf %11, %49 : vector<8x1xf32>
    %cst_32 = arith.constant 1.000000e-07 : f32
    %52 = vector.broadcast %cst_32 : f32 to vector<8x1xf32>
    %53 = arith.addf %51, %52 : vector<8x1xf32>
    %54 = math.rsqrt %53 : vector<8x1xf32>
    %cst_33 = arith.constant 1.000000e-07 : f32
    %55 = vector.broadcast %cst_33 : f32 to vector<16x1xf32>
    %56 = arith.addf %10, %55 : vector<16x1xf32>
    %cst_34 = arith.constant 1.000000e+00 : f32
    %57 = vector.broadcast %cst_34 : f32 to vector<16x1xf32>
    %58 = arith.divf %57, %56 : vector<16x1xf32>
    %cst_35 = arith.constant 1.000000e-07 : f32
    %59 = vector.broadcast %cst_35 : f32 to vector<16x1xf32>
    %60 = arith.addf %50, %59 : vector<16x1xf32>
    %cst_36 = arith.constant 1.000000e+00 : f32
    %61 = vector.broadcast %cst_36 : f32 to vector<16x1xf32>
    %62 = arith.divf %61, %60 : vector<16x1xf32>
    %63 = vector.broadcast %54 : vector<8x1xf32> to vector<8x128xf32>
    %64 = arith.mulf %63, %2 : vector<8x128xf32>
    %cst_37 = arith.constant dense<0.000000e+00> : vector<16x128xf32>
    %65 = tpu.matmul %0, %64, %cst_37 {dimension_numbers = #tpu.dot_dimension_numbers<[1], [0], [0], [1], [0, 0, 1, 1], [], []>} : vector<16x8xf32>, vector<8x128xf32>, vector<16x128xf32> -> vector<16x128xf32>
    %66 = vector.broadcast %58 : vector<16x1xf32> to vector<16x128xf32>
    %67 = arith.mulf %66, %65 : vector<16x128xf32>
    %cst_38 = arith.constant dense<0.000000e+00> : vector<8x128xf32>
    %68 = tpu.matmul %0, %67, %cst_38 {dimension_numbers = #tpu.dot_dimension_numbers<[0], [0], [1], [1], [0, 1, 1, 1], [], []>} : vector<16x8xf32>, vector<16x128xf32>, vector<8x128xf32> -> vector<8x128xf32>
    %cst_39 = arith.constant dense<0.000000e+00> : vector<16x128xf32>
    %69 = tpu.matmul %7, %65, %cst_39 {dimension_numbers = #tpu.dot_dimension_numbers<[1], [0], [0], [1], [0, 0, 1, 1], [], []>} : vector<16x16xf32>, vector<16x128xf32>, vector<16x128xf32> -> vector<16x128xf32>
    %70 = vector.broadcast %62 : vector<16x1xf32> to vector<16x128xf32>
    %71 = arith.mulf %70, %69 : vector<16x128xf32>
    %cst_40 = arith.constant dense<0.000000e+00> : vector<16x128xf32>
    %72 = tpu.matmul %7, %71, %cst_40 {dimension_numbers = #tpu.dot_dimension_numbers<[1], [0], [0], [1], [0, 0, 1, 1], [], []>} : vector<16x16xf32>, vector<16x128xf32>, vector<16x128xf32> -> vector<16x128xf32>
    %cst_41 = arith.constant dense<0.000000e+00> : vector<8x128xf32>
    %73 = tpu.matmul %0, %72, %cst_41 {dimension_numbers = #tpu.dot_dimension_numbers<[0], [0], [1], [1], [0, 1, 1, 1], [], []>} : vector<16x8xf32>, vector<16x128xf32>, vector<8x128xf32> -> vector<8x128xf32>
    %74 = arith.addf %68, %73 : vector<8x128xf32>
    %75 = vector.broadcast %54 : vector<8x1xf32> to vector<8x128xf32>
    %76 = arith.mulf %75, %74 : vector<8x128xf32>
    %77 = arith.addf %76, %2 : vector<8x128xf32>
    %cst_42 = arith.constant dense<0.000000e+00> : vector<8x128xf32>
    %78 = tpu.matmul %77, %3, %cst_42 {dimension_numbers = #tpu.dot_dimension_numbers<[1], [0], [0], [1], [0, 0, 1, 1], [], []>} : vector<8x128xf32>, vector<128x128xf32>, vector<8x128xf32> -> vector<8x128xf32>
    %79 = vector.broadcast %4 : vector<1x128xf32> to vector<8x128xf32>
    %80 = arith.addf %78, %79 : vector<8x128xf32>
    %c0_43 = arith.constant 0 : index
    %c0_44 = arith.constant 0 : index
    %81 = vector.load %arg6[%c0_43, %c0_44] : memref<8x128xf32, #tpu.memory_space<vmem>>, vector<8x128xf32>
    tpu.vector_store %arg6[%c0_43, %c0_44], %80 {strides = array<i32>} : memref<8x128xf32, #tpu.memory_space<vmem>>, vector<8x128xf32>,
    return
  }
}

</mosaic_0001>

<llo_original>
// kernel: tpu_custom_call.1
$region0: #{tpu_custom_call.1}
  #allocation0 [shape = 'u32[]', space=smem, size = 0x4, offset = 0x4, fixed_abs, tag = 'smem constant byte address 0x4 - core index']
  #allocation1 [shape = 'u32[144,128]{1,0:T(1,128)}', space=vmem, size = 0x12000, scoped, tag = 'internal scratch']
  %s0 = inlined_call_operand.vmem [shape: f32[16,8], index: 0, kind: input, shape index: {}]
  %s1 = inlined_call_operand.vmem [shape: f32[16,128], index: 1, kind: input, shape index: {}]
  %s2 = inlined_call_operand.vmem [shape: f32[8,128], index: 2, kind: input, shape index: {}]
  %s3 = inlined_call_operand.hbm [shape: f32[128,128], index: 3, kind: input, shape index: {}]
  %s4 = inlined_call_operand.vmem [shape: f32[1,128], index: 4, kind: input, shape index: {}]
  %s5 = inlined_call_operand.hbm [shape: f32[16,128], index: 5, kind: output, shape index: {0}]
  %s6 = inlined_call_operand.hbm [shape: f32[8,128], index: 6, kind: output, shape index: {1}]
  %7 = xla_tuple %s5, %s6
  %s8 = sld [smem:[#allocation0]]
  $region42: #{tpu_custom_call.1} parent=0
    _
  %s10 = ssub.s32 1, %s8
  %s11 = scalar_select 0, %s10, %s8
  $region1: #{tpu_custom_call.1} parent=0
    #allocation2 [shape = 'u8[65536]{0}', space=vmem, size = 0x10000, scoped, tag = 'input window, operand 3, single buffered']
    #allocation3 [shape = 's32[1]{0}', space=sflag, size = 0x4, scoped, tag = 'scoped memory for tpu_custom_call.1']
    #allocation4 [shape = 's32[1]{0}', space=sflag, size = 0x4, scoped, tag = 'scoped memory for tpu_custom_call.1']
    #allocation5 [shape = 'u8[8192]{0}', space=vmem, size = 0x2000, scoped, tag = 'output window, operand 0, single buffered']
    #allocation6 [shape = 'u8[4096]{0}', space=vmem, size = 0x1000, scoped, tag = 'output window, operand 1, single buffered']
    #allocation7 [shape = 's32[1]{0}', space=sflag, size = 0x4, scoped, tag = 'scoped memory for tpu_custom_call.1']
    %12 = vsyncpa [#allocation3], 0
    %13 = vsyncpa [#allocation4], 0
    %14 = vsyncpa [#allocation7], 0
    // Predicated region
    $region2: #{tpu_custom_call.1} parent=1 // pred_check
      _
    $region3: #{tpu_custom_call.1} parent=1 // pred_check_branch
      %16 = sbr.rel (0) target = $region5
    $region4: #{tpu_custom_call.1} parent=1 // pred_region
      _
    $region5: #{tpu_custom_call.1} parent=1 // pred_fallthru
      _
    // Predicated region
    $region6: #{tpu_custom_call.1} parent=1 // pred_check
      _
    $region7: #{tpu_custom_call.1} parent=1 // pred_check_branch
      %18 = sbr.rel (0) target = $region9
    $region8: #{tpu_custom_call.1} parent=1 // pred_region
      _
    $region9: #{tpu_custom_call.1} parent=1 // pred_fallthru
      _
    // Predicated region
    $region10: #{tpu_custom_call.1} parent=1 // pred_check
      _
    $region11: #{tpu_custom_call.1} parent=1 // pred_check_branch
      %20 = sbr.rel (0) target = $region13
    $region12: #{tpu_custom_call.1} parent=1 // pred_region
      _
    $region13: #{tpu_custom_call.1} parent=1 // pred_fallthru
      _
    // Predicated region
    $region14: #{tpu_custom_call.1} parent=1 // pred_check
      _
    $region15: #{tpu_custom_call.1} parent=1 // pred_check_branch
      %22 = sbr.rel (0) target = $region17
    $region16: #{tpu_custom_call.1} parent=1 // pred_region
      %s24 = ssub.s32 2048, 2048
      %25 = vsyncadd [#allocation3], %s24
      %s26 = sshll.u32 [#allocation2], 4
      %s27 = int_to_ptr.vmem [resolvable:$true] %s26
      %32 = dma.hbm_to_vmem [thread:$0]  %s3, 2048, %s27, [#allocation3], 128, 128, 8
    $region17: #{tpu_custom_call.1} parent=1 // pred_fallthru
      _
    // Predicated region
    $region18: #{tpu_custom_call.1} parent=1 // pred_check
      _
    $region19: #{tpu_custom_call.1} parent=1 // pred_check_branch
      %34 = sbr.rel (0) target = $region21
    $region20: #{tpu_custom_call.1} parent=1 // pred_region
      _
    $region21: #{tpu_custom_call.1} parent=1 // pred_fallthru
      _
    // Predicated region
    $region22: #{tpu_custom_call.1} parent=1 // pred_check
      _
    $region23: #{tpu_custom_call.1} parent=1 // pred_check_branch
      %36 = sbr.rel (0) target = $region25
    $region24: #{tpu_custom_call.1} parent=1 // pred_region
      %37 = dma.done [#allocation3], 2048
    $region25: #{tpu_custom_call.1} parent=1 // pred_fallthru
      _
    %v39 = vld [vmem:[%s0] sm:$0xff]
    %v40 = vld [vmem:[%s0 + $0x8] sm:$0xff]
    %v41 = vld [vmem:[%s1] sm:$0xff]
    %v42 = vld [vmem:[%s1 + $0x8] sm:$0xff]
    %v43 = vld [vmem:[%s2] sm:$0xff]
    %v44 = vld [vmem:[#allocation2] sm:$0xff]
    %v45 = vld [vmem:[#allocation2 + $0x8] sm:$0xff]
    %v46 = vld [vmem:[#allocation2 + $0x10] sm:$0xff]
    %v47 = vld [vmem:[#allocation2 + $0x18] sm:$0xff]
    %v48 = vld [vmem:[#allocation2 + $0x20] sm:$0xff]
    %v49 = vld [vmem:[#allocation2 + $0x28] sm:$0xff]
    %v50 = vld [vmem:[#allocation2 + $0x30] sm:$0xff]
    %v51 = vld [vmem:[#allocation2 + $0x38] sm:$0xff]
    %v52 = vld [vmem:[#allocation2 + $0x40] sm:$0xff]
    %v53 = vld [vmem:[#allocation2 + $0x48] sm:$0xff]
    %v54 = vld [vmem:[#allocation2 + $0x50] sm:$0xff]
    %v55 = vld [vmem:[#allocation2 + $0x58] sm:$0xff]
    %v56 = vld [vmem:[#allocation2 + $0x60] sm:$0xff]
    %v57 = vld [vmem:[#allocation2 + $0x68] sm:$0xff]
    %v58 = vld [vmem:[#allocation2 + $0x70] sm:$0xff]
    %v59 = vld [vmem:[#allocation2 + $0x78] sm:$0xff]
    %v60 = vld [vmem:[%s4] sm:$0x1]
    %v61 = vpack.c.bf16 %v40, %v39
    %62 = vxpose.xlu0.c.b16.start [1/8] %v61, 128
    %63 = vxpose.xlu0.c.b16.cont [2/8] 0, 128
    %64 = vxpose.xlu0.c.b16.cont [3/8] 0, 128
    %65 = vxpose.xlu0.c.b16.cont [4/8] 0, 128
    %66 = vxpose.xlu0.c.b16.cont [5/8] 0, 128
    %67 = vxpose.xlu0.c.b16.cont [6/8] 0, 128
    %68 = vxpose.xlu0.c.b16.cont [7/8] 0, 128
    %69 = vxpose.xlu0.c.b16.end [8/8] 0, 128
    %v70 = vpop.trf.xlu0
    %v71 = vpop.trf.xlu0
    %v72 = vpop.trf.xlu0
    %v73 = vpop.trf.xlu0
    %v74 = vpop.trf.xlu0
    %v75 = vpop.trf.xlu0
    %v76 = vpop.trf.xlu0
    %v77 = vpop.trf.xlu0
    %vm78 = vcmask 130048
    %v80 = vsel %vm78, %v70, 0
    %82 = vmatprep.subr.bf16.mxu0 0
    %83 = vmatpush1.bf16.msra.mxu0 %v61
    %84 = vmatprep.subr.bf16.mxu0 0
    %85 = vmatpush1.bf16.msra.mxu0 0
    %86 = vmatprep.subr.bf16.mxu0 0
    %87 = vmatpush1.bf16.msra.mxu0 0
    %88 = vmatprep.subr.bf16.mxu0 0
    %89 = vmatpush1.bf16.msra.mxu0 0
    %90 = vmatprep.subr.bf16.mxu0 0
    %91 = vmatpush1.bf16.msra.mxu0 0
    %92 = vmatprep.subr.bf16.mxu0 0
    %93 = vmatpush1.bf16.msra.mxu0 0
    %94 = vmatprep.subr.bf16.mxu0 0
    %95 = vmatpush1.bf16.msra.mxu0 0
    %96 = vmatprep.subr.bf16.mxu0 0
    %97 = vmatpush1.bf16.msra.mxu0 0
    %98 = vmatprep.subr.bf16.mxu0 0
    %99 = vmatpush1.bf16.msra.mxu0 0
    %100 = vmatprep.subr.bf16.mxu0 0
    %101 = vmatpush1.bf16.msra.mxu0 0
    %102 = vmatprep.subr.bf16.mxu0 0
    %103 = vmatpush1.bf16.msra.mxu0 0
    %104 = vmatprep.subr.bf16.mxu0 0
    %105 = vmatpush1.bf16.msra.mxu0 0
    %106 = vmatprep.subr.bf16.mxu0 0
    %107 = vmatpush1.bf16.msra.mxu0 0
    %108 = vmatprep.subr.bf16.mxu0 0
    %109 = vmatpush1.bf16.msra.mxu0 0
    %110 = vmatprep.subr.bf16.mxu0 0
    %111 = vmatpush1.bf16.msra.mxu0 0
    %112 = vmatprep.subr.bf16.mxu0 0
    %113 = vmatpush1.bf16.msra.mxu0 0
    %114 = vmatprep.mubr.bf16.mxu0 0
    %115 = vmatmul.mubr.bf16.gmra.mrb[0].mxu0 %v80
    %v116 = vpop.f32.mrb[0].mxu0
    %v117 = vadd.f32 0.0, %v116
    %v118 = vpop.f32.mrb[0].mxu0
    %v119 = vpop.f32.mrb[0].mxu0
    %v120 = vpop.f32.mrb[0].mxu0
    %121 = vdwg.mxu0
    %vm122 = vcmask 64512
    %v124 = vsel %vm122, %v61, 0
    %126 = vmatprep.subr.bf16.mxu0 0
    %127 = vmatpush1.bf16.xpose.msra.mxu0 %v124
    %128 = vmatprep.subr.bf16.mxu0 0
    %129 = vmatpush1.bf16.xpose.msra.mxu0 0
    %130 = vmatprep.subr.bf16.mxu0 0
    %131 = vmatpush1.bf16.xpose.msra.mxu0 0
    %132 = vmatprep.subr.bf16.mxu0 0
    %133 = vmatpush1.bf16.xpose.msra.mxu0 0
    %134 = vmatprep.subr.bf16.mxu0 0
    %135 = vmatpush1.bf16.xpose.msra.mxu0 0
    %136 = vmatprep.subr.bf16.mxu0 0
    %137 = vmatpush1.bf16.xpose.msra.mxu0 0
    %138 = vmatprep.subr.bf16.mxu0 0
    %139 = vmatpush1.bf16.xpose.msra.mxu0 0
    %140 = vmatprep.subr.bf16.mxu0 0
    %141 = vmatpush1.bf16.xpose.msra.mxu0 0
    %142 = vmatprep.subr.bf16.mxu0 0
    %143 = vmatpush1.bf16.xpose.msra.mxu0 0
    %144 = vmatprep.subr.bf16.mxu0 0
    %145 = vmatpush1.bf16.xpose.msra.mxu0 0
    %146 = vmatprep.subr.bf16.mxu0 0
    %147 = vmatpush1.bf16.xpose.msra.mxu0 0
    %148 = vmatprep.subr.bf16.mxu0 0
    %149 = vmatpush1.bf16.xpose.msra.mxu0 0
    %150 = vmatprep.subr.bf16.mxu0 0
    %151 = vmatpush1.bf16.xpose.msra.mxu0 0
    %152 = vmatprep.subr.bf16.mxu0 0
    %153 = vmatpush1.bf16.xpose.msra.mxu0 0
    %154 = vmatprep.subr.bf16.mxu0 0
    %155 = vmatpush1.bf16.xpose.msra.mxu0 0
    %156 = vmatprep.subr.bf16.mxu0 0
    %157 = vmatpush1.bf16.xpose.msra.mxu0 0
    %158 = vmatprep.mubr.bf16.mxu0 0
    %159 = vmatmul.mubr.bf16.gmra.mrb[0].mxu0 %v124
    %v160 = vpop.f32.mrb[0].mxu0
    %v161 = vadd.f32 0.0, %v160
    %v162 = vpop.f32.mrb[0].mxu0
    %v163 = vpop.f32.mrb[0].mxu0
    %v164 = vadd.f32 0.0, %v163
    %v165 = vpop.f32.mrb[0].mxu0
    %166 = vdwg.mxu0
    %v167 = vsel %vm122, %v39, 0.0
    %168 = vadd.xlane.f32.xlu0 %v167
    %v169 = vpop.xlane.xlu0 %168
    %v170 = vsel %vm122, %v40, 0.0
    %171 = vadd.xlane.f32.xlu0 %v170
    %v172 = vpop.xlane.xlu0 %171
    %173 = vxpose.xlu0.b32.start [1/16] %v39, 128
    %174 = vxpose.xlu0.b32.cont [2/16] %v40, 128
    %175 = vxpose.xlu0.b32.cont [3/16] 0.0, 128
    %176 = vxpose.xlu0.b32.cont [4/16] 0.0, 128
    %177 = vxpose.xlu0.b32.cont [5/16] 0.0, 128
    %178 = vxpose.xlu0.b32.cont [6/16] 0.0, 128
    %179 = vxpose.xlu0.b32.cont [7/16] 0.0, 128
    %180 = vxpose.xlu0.b32.cont [8/16] 0.0, 128
    %181 = vxpose.xlu0.b32.cont [9/16] 0.0, 128
    %182 = vxpose.xlu0.b32.cont [10/16] 0.0, 128
    %183 = vxpose.xlu0.b32.cont [11/16] 0.0, 128
    %184 = vxpose.xlu0.b32.cont [12/16] 0.0, 128
    %185 = vxpose.xlu0.b32.cont [13/16] 0.0, 128
    %186 = vxpose.xlu0.b32.cont [14/16] 0.0, 128
    %187 = vxpose.xlu0.b32.cont [15/16] 0.0, 128
    %188 = vxpose.xlu0.b32.end [16/16] 0.0, 128
    %v189 = vpop.trf.xlu0
    %v190 = vpop.trf.xlu0
    %v191 = vpop.trf.xlu0
    %v192 = vpop.trf.xlu0
    %v193 = vpop.trf.xlu0
    %v194 = vpop.trf.xlu0
    %v195 = vpop.trf.xlu0
    %v196 = vpop.trf.xlu0
    %v197 = vpop.trf.xlu0
    %v198 = vpop.trf.xlu0
    %v199 = vpop.trf.xlu0
    %v200 = vpop.trf.xlu0
    %v201 = vpop.trf.xlu0
    %v202 = vpop.trf.xlu0
    %v203 = vpop.trf.xlu0
    %v204 = vpop.trf.xlu0
    %v206 = vsel %vm78, %v189, 0
    %208 = vmatprep.subr.mxu0 0.0
    %209 = vmatpush1.msra.mxu0 1.0
    %210 = vmatprep.subr.mxu0 0.0
    %211 = vmatpush1.msra.mxu0 1.0
    %212 = vmatprep.subr.mxu0 0.0
    %213 = vmatpush1.msra.mxu0 0.0
    %214 = vmatprep.subr.mxu0 0.0
    %215 = vmatpush1.msra.mxu0 0.0
    %216 = vmatprep.subr.mxu0 0.0
    %217 = vmatpush1.msra.mxu0 0.0
    %218 = vmatprep.subr.mxu0 0.0
    %219 = vmatpush1.msra.mxu0 0.0
    %220 = vmatprep.subr.mxu0 0.0
    %221 = vmatpush1.msra.mxu0 0.0
    %222 = vmatprep.subr.mxu0 0.0
    %223 = vmatpush1.msra.mxu0 0.0
    %224 = vmatprep.subr.mxu0 0.0
    %225 = vmatpush1.msra.mxu0 0.0
    %226 = vmatprep.subr.mxu0 0.0
    %227 = vmatpush1.msra.mxu0 0.0
    %228 = vmatprep.subr.mxu0 0.0
    %229 = vmatpush1.msra.mxu0 0.0
    %230 = vmatprep.subr.mxu0 0.0
    %231 = vmatpush1.msra.mxu0 0.0
    %232 = vmatprep.subr.mxu0 0.0
    %233 = vmatpush1.msra.mxu0 0.0
    %234 = vmatprep.subr.mxu0 0.0
    %235 = vmatpush1.msra.mxu0 0.0
    %236 = vmatprep.subr.mxu0 0.0
    %237 = vmatpush1.msra.mxu0 0.0
    %238 = vmatprep.subr.mxu0 0.0
    %239 = vmatpush1.msra.mxu0 0.0
    %240 = vmatprep.subr.mxu0 0.0
    %241 = vmatpush1.msra.mxu0 0.0
    %242 = vmatprep.subr.mxu0 0.0
    %243 = vmatpush1.msra.mxu0 0.0
    %244 = vmatprep.subr.mxu0 0.0
    %245 = vmatpush1.msra.mxu0 0.0
    %246 = vmatprep.subr.mxu0 0.0
    %247 = vmatpush1.msra.mxu0 0.0
    %248 = vmatprep.subr.mxu0 0.0
    %249 = vmatpush1.msra.mxu0 0.0
    %250 = vmatprep.subr.mxu0 0.0
    %251 = vmatpush1.msra.mxu0 0.0
    %252 = vmatprep.subr.mxu0 0.0
    %253 = vmatpush1.msra.mxu0 0.0
    %254 = vmatprep.subr.mxu0 0.0
    %255 = vmatpush1.msra.mxu0 0.0
    %256 = vmatprep.subr.mxu0 0.0
    %257 = vmatpush1.msra.mxu0 0.0
    %258 = vmatprep.subr.mxu0 0.0
    %259 = vmatpush1.msra.mxu0 0.0
    %260 = vmatprep.subr.mxu0 0.0
    %261 = vmatpush1.msra.mxu0 0.0
    %262 = vmatprep.subr.mxu0 0.0
    %263 = vmatpush1.msra.mxu0 0.0
    %264 = vmatprep.subr.mxu0 0.0
    %265 = vmatpush1.msra.mxu0 0.0
    %266 = vmatprep.subr.mxu0 0.0
    %267 = vmatpush1.msra.mxu0 0.0
    %268 = vmatprep.subr.mxu0 0.0
    %269 = vmatpush1.msra.mxu0 0.0
    %270 = vmatprep.subr.mxu0 0.0
    %271 = vmatpush1.msra.mxu0 0.0
    %272 = vmatprep.mubr.f32.mxu0 0.0
    %273 = vmatmul.mubr.f32.gmra.mrb[0].mxu0 %v206
    %v274 = vpop.f32.mrb[0].mxu0
    %v275 = vadd.f32 0.0, %v274
    %v276 = vpop.f32.mrb[0].mxu0
    %277 = vdwg.mxu0
    %v278 = vsel %vm122, %v117, 0.0
    %279 = vadd.xlane.f32.xlu0 %v278
    %v280 = vpop.xlane.xlu0 %279
    %v282 = vsel %vm122, %v39, 0
    %v285 = vsel %vm122, %v40, 0
    %287 = vmatprep.subr.mxu0 0.0
    %288 = vmatpush1.msra.mxu0 %v280
    %289 = vmatprep.subr.mxu0 0.0
    %290 = vmatpush1.msra.mxu0 0.0
    %291 = vmatprep.subr.mxu0 0.0
    %292 = vmatpush1.msra.mxu0 0.0
    %293 = vmatprep.subr.mxu0 0.0
    %294 = vmatpush1.msra.mxu0 0.0
    %295 = vmatprep.subr.mxu0 0.0
    %296 = vmatpush1.msra.mxu0 0.0
    %297 = vmatprep.subr.mxu0 0.0
    %298 = vmatpush1.msra.mxu0 0.0
    %299 = vmatprep.subr.mxu0 0.0
    %300 = vmatpush1.msra.mxu0 0.0
    %301 = vmatprep.subr.mxu0 0.0
    %302 = vmatpush1.msra.mxu0 0.0
    %303 = vmatprep.subr.mxu0 0.0
    %304 = vmatpush1.msra.mxu0 0.0
    %305 = vmatprep.subr.mxu0 0.0
    %306 = vmatpush1.msra.mxu0 0.0
    %307 = vmatprep.subr.mxu0 0.0
    %308 = vmatpush1.msra.mxu0 0.0
    %309 = vmatprep.subr.mxu0 0.0
    %310 = vmatpush1.msra.mxu0 0.0
    %311 = vmatprep.subr.mxu0 0.0
    %312 = vmatpush1.msra.mxu0 0.0
    %313 = vmatprep.subr.mxu0 0.0
    %314 = vmatpush1.msra.mxu0 0.0
    %315 = vmatprep.subr.mxu0 0.0
    %316 = vmatpush1.msra.mxu0 0.0
    %317 = vmatprep.subr.mxu0 0.0
    %318 = vmatpush1.msra.mxu0 0.0
    %319 = vmatprep.subr.mxu0 0.0
    %320 = vmatpush1.msra.mxu0 0.0
    %321 = vmatprep.subr.mxu0 0.0
    %322 = vmatpush1.msra.mxu0 0.0
    %323 = vmatprep.subr.mxu0 0.0
    %324 = vmatpush1.msra.mxu0 0.0
    %325 = vmatprep.subr.mxu0 0.0
    %326 = vmatpush1.msra.mxu0 0.0
    %327 = vmatprep.subr.mxu0 0.0
    %328 = vmatpush1.msra.mxu0 0.0
    %329 = vmatprep.subr.mxu0 0.0
    %330 = vmatpush1.msra.mxu0 0.0
    %331 = vmatprep.subr.mxu0 0.0
    %332 = vmatpush1.msra.mxu0 0.0
    %333 = vmatprep.subr.mxu0 0.0
    %334 = vmatpush1.msra.mxu0 0.0
    %335 = vmatprep.subr.mxu0 0.0
    %336 = vmatpush1.msra.mxu0 0.0
    %337 = vmatprep.subr.mxu0 0.0
    %338 = vmatpush1.msra.mxu0 0.0
    %339 = vmatprep.subr.mxu0 0.0
    %340 = vmatpush1.msra.mxu0 0.0
    %341 = vmatprep.subr.mxu0 0.0
    %342 = vmatpush1.msra.mxu0 0.0
    %343 = vmatprep.subr.mxu0 0.0
    %344 = vmatpush1.msra.mxu0 0.0
    %345 = vmatprep.subr.mxu0 0.0
    %346 = vmatpush1.msra.mxu0 0.0
    %347 = vmatprep.subr.mxu0 0.0
    %348 = vmatpush1.msra.mxu0 0.0
    %349 = vmatprep.subr.mxu0 0.0
    %350 = vmatpush1.msra.mxu0 0.0
    %351 = vmatprep.mubr.f32.mxu0 0.0
    %352 = vmatmul.mubr.f32.gmra.mrb[0].mxu0 %v282
    %v353 = vpop.f32.mrb[0].mxu0
    %v354 = vadd.f32 0.0, %v353
    %v355 = vpop.f32.mrb[0].mxu0
    %356 = vmatprep.mubr.f32.mxu0 0.0
    %357 = vmatmul.mubr.f32.gmra.mrb[0].mxu0 %v285
    %v358 = vpop.f32.mrb[0].mxu0
    %v359 = vadd.f32 0.0, %v358
    %v360 = vpop.f32.mrb[0].mxu0
    %361 = vdwg.mxu0
    %v362 = vadd.f32 %v169, %v354
    %v363 = vadd.f32 %v172, %v359
    %v364 = vadd.f32 %v362, 1e-07
    %v365 = vadd.f32 %v363, 1e-07
    %v366 = vrsqrt.pop %v364
    %v367 = vrsqrt.pop %v365
    %v368 = vadd.f32 %v275, 1e-07
    %v369 = vrcp.pop %v368
    %v370 = vmul.f32 1.0, %v369
    %v372 = vsel %vm122, %v117, 0
    %374 = vmatprep.subr.mxu0 0.0
    %375 = vmatpush1.msra.mxu0 %v275
    %376 = vmatprep.subr.mxu0 0.0
    %377 = vmatpush1.msra.mxu0 0.0
    %378 = vmatprep.subr.mxu0 0.0
    %379 = vmatpush1.msra.mxu0 0.0
    %380 = vmatprep.subr.mxu0 0.0
    %381 = vmatpush1.msra.mxu0 0.0
    %382 = vmatprep.subr.mxu0 0.0
    %383 = vmatpush1.msra.mxu0 0.0
    %384 = vmatprep.subr.mxu0 0.0
    %385 = vmatpush1.msra.mxu0 0.0
    %386 = vmatprep.subr.mxu0 0.0
    %387 = vmatpush1.msra.mxu0 0.0
    %388 = vmatprep.subr.mxu0 0.0
    %389 = vmatpush1.msra.mxu0 0.0
    %390 = vmatprep.subr.mxu0 0.0
    %391 = vmatpush1.msra.mxu0 0.0
    %392 = vmatprep.subr.mxu0 0.0
    %393 = vmatpush1.msra.mxu0 0.0
    %394 = vmatprep.subr.mxu0 0.0
    %395 = vmatpush1.msra.mxu0 0.0
    %396 = vmatprep.subr.mxu0 0.0
    %397 = vmatpush1.msra.mxu0 0.0
    %398 = vmatprep.subr.mxu0 0.0
    %399 = vmatpush1.msra.mxu0 0.0
    %400 = vmatprep.subr.mxu0 0.0
    %401 = vmatpush1.msra.mxu0 0.0
    %402 = vmatprep.subr.mxu0 0.0
    %403 = vmatpush1.msra.mxu0 0.0
    %404 = vmatprep.subr.mxu0 0.0
    %405 = vmatpush1.msra.mxu0 0.0
    %406 = vmatprep.subr.mxu0 0.0
    %407 = vmatpush1.msra.mxu0 0.0
    %408 = vmatprep.subr.mxu0 0.0
    %409 = vmatpush1.msra.mxu0 0.0
    %410 = vmatprep.subr.mxu0 0.0
    %411 = vmatpush1.msra.mxu0 0.0
    %412 = vmatprep.subr.mxu0 0.0
    %413 = vmatpush1.msra.mxu0 0.0
    %414 = vmatprep.subr.mxu0 0.0
    %415 = vmatpush1.msra.mxu0 0.0
    %416 = vmatprep.subr.mxu0 0.0
    %417 = vmatpush1.msra.mxu0 0.0
    %418 = vmatprep.subr.mxu0 0.0
    %419 = vmatpush1.msra.mxu0 0.0
    %420 = vmatprep.subr.mxu0 0.0
    %421 = vmatpush1.msra.mxu0 0.0
    %422 = vmatprep.subr.mxu0 0.0
    %423 = vmatpush1.msra.mxu0 0.0
    %424 = vmatprep.subr.mxu0 0.0
    %425 = vmatpush1.msra.mxu0 0.0
    %426 = vmatprep.subr.mxu0 0.0
    %427 = vmatpush1.msra.mxu0 0.0
    %428 = vmatprep.subr.mxu0 0.0
    %429 = vmatpush1.msra.mxu0 0.0
    %430 = vmatprep.subr.mxu0 0.0
    %431 = vmatpush1.msra.mxu0 0.0
    %432 = vmatprep.subr.mxu0 0.0
    %433 = vmatpush1.msra.mxu0 0.0
    %434 = vmatprep.subr.mxu0 0.0
    %435 = vmatpush1.msra.mxu0 0.0
    %436 = vmatprep.subr.mxu0 0.0
    %437 = vmatpush1.msra.mxu0 0.0
    %438 = vmatprep.mubr.f32.mxu0 0.0
    %439 = vmatmul.mubr.f32.gmra.mrb[0].mxu0 %v372
    %v440 = vpop.f32.mrb[0].mxu0
    %v441 = vadd.f32 1e-07, %v440
    %v442 = vpop.f32.mrb[0].mxu0
    %443 = vdwg.mxu0
    %v444 = vrcp.pop %v441
    %v445 = vmul.f32 1.0, %v444
    %447 = vset.pattern.permute.xlu0 0
    %448 = vperm.xlu0 %447, %v366
    %v449 = vpop.permute.xlu0 %448
    %452 = vset.pattern.permute.xlu0 0
    %453 = vperm.xlu0 %452, %v367
    %v454 = vpop.permute.xlu0 %453
    %v456 = vmul.f32 %v449, %v41
    %v457 = vmul.f32 %v454, %v42
    %458 = vmatprep.subr.mxu0 0.0
    %459 = vmatpush1.msra.mxu0 %v456
    %460 = vmatprep.subr.mxu0 0.0
    %461 = vmatpush1.msra.mxu0 %v457
    %462 = vmatprep.subr.mxu0 0.0
    %463 = vmatpush1.msra.mxu0 0.0
    %464 = vmatprep.subr.mxu0 0.0
    %465 = vmatpush1.msra.mxu0 0.0
    %466 = vmatprep.subr.mxu0 0.0
    %467 = vmatpush1.msra.mxu0 0.0
    %468 = vmatprep.subr.mxu0 0.0
    %469 = vmatpush1.msra.mxu0 0.0
    %470 = vmatprep.subr.mxu0 0.0
    %471 = vmatpush1.msra.mxu0 0.0
    %472 = vmatprep.subr.mxu0 0.0
    %473 = vmatpush1.msra.mxu0 0.0
    %474 = vmatprep.subr.mxu0 0.0
    %475 = vmatpush1.msra.mxu0 0.0
    %476 = vmatprep.subr.mxu0 0.0
    %477 = vmatpush1.msra.mxu0 0.0
    %478 = vmatprep.subr.mxu0 0.0
    %479 = vmatpush1.msra.mxu0 0.0
    %480 = vmatprep.subr.mxu0 0.0
    %481 = vmatpush1.msra.mxu0 0.0
    %482 = vmatprep.subr.mxu0 0.0
    %483 = vmatpush1.msra.mxu0 0.0
    %484 = vmatprep.subr.mxu0 0.0
    %485 = vmatpush1.msra.mxu0 0.0
    %486 = vmatprep.subr.mxu0 0.0
    %487 = vmatpush1.msra.mxu0 0.0
    %488 = vmatprep.subr.mxu0 0.0
    %489 = vmatpush1.msra.mxu0 0.0
    %490 = vmatprep.subr.mxu0 0.0
    %491 = vmatpush1.msra.mxu0 0.0
    %492 = vmatprep.subr.mxu0 0.0
    %493 = vmatpush1.msra.mxu0 0.0
    %494 = vmatprep.subr.mxu0 0.0
    %495 = vmatpush1.msra.mxu0 0.0
    %496 = vmatprep.subr.mxu0 0.0
    %497 = vmatpush1.msra.mxu0 0.0
    %498 = vmatprep.subr.mxu0 0.0
    %499 = vmatpush1.msra.mxu0 0.0
    %500 = vmatprep.subr.mxu0 0.0
    %501 = vmatpush1.msra.mxu0 0.0
    %502 = vmatprep.subr.mxu0 0.0
    %503 = vmatpush1.msra.mxu0 0.0
    %504 = vmatprep.subr.mxu0 0.0
    %505 = vmatpush1.msra.mxu0 0.0
    %506 = vmatprep.subr.mxu0 0.0
    %507 = vmatpush1.msra.mxu0 0.0
    %508 = vmatprep.subr.mxu0 0.0
    %509 = vmatpush1.msra.mxu0 0.0
    %510 = vmatprep.subr.mxu0 0.0
    %511 = vmatpush1.msra.mxu0 0.0
    %512 = vmatprep.subr.mxu0 0.0
    %513 = vmatpush1.msra.mxu0 0.0
    %514 = vmatprep.subr.mxu0 0.0
    %515 = vmatpush1.msra.mxu0 0.0
    %516 = vmatprep.subr.mxu0 0.0
    %517 = vmatpush1.msra.mxu0 0.0
    %518 = vmatprep.subr.mxu0 0.0
    %519 = vmatpush1.msra.mxu0 0.0
    %520 = vmatprep.subr.mxu0 0.0
    %521 = vmatpush1.msra.mxu0 0.0
    %522 = vmatprep.mubr.f32.mxu0 0.0
    %523 = vmatmul.mubr.f32.gmra.mrb[0].mxu0 %v206
    %v524 = vpop.f32.mrb[0].mxu0
    %v525 = vadd.f32 0.0, %v524
    %v526 = vpop.f32.mrb[0].mxu0
    %527 = vdwg.mxu0
    %529 = vset.pattern.permute.xlu0 0
    %530 = vperm.xlu0 %529, %v370
    %v531 = vpop.permute.xlu0 %530
    %v533 = vmul.f32 %v531, %v525
    %534 = vmatprep.subr.mxu0 0.0
    %535 = vmatpush1.msra.mxu0 %v525
    %536 = vmatprep.subr.mxu0 0.0
    %537 = vmatpush1.msra.mxu0 0.0
    %538 = vmatprep.subr.mxu0 0.0
    %539 = vmatpush1.msra.mxu0 0.0
    %540 = vmatprep.subr.mxu0 0.0
    %541 = vmatpush1.msra.mxu0 0.0
    %542 = vmatprep.subr.mxu0 0.0
    %543 = vmatpush1.msra.mxu0 0.0
    %544 = vmatprep.subr.mxu0 0.0
    %545 = vmatpush1.msra.mxu0 0.0
    %546 = vmatprep.subr.mxu0 0.0
    %547 = vmatpush1.msra.mxu0 0.0
    %548 = vmatprep.subr.mxu0 0.0
    %549 = vmatpush1.msra.mxu0 0.0
    %550 = vmatprep.subr.mxu0 0.0
    %551 = vmatpush1.msra.mxu0 0.0
    %552 = vmatprep.subr.mxu0 0.0
    %553 = vmatpush1.msra.mxu0 0.0
    %554 = vmatprep.subr.mxu0 0.0
    %555 = vmatpush1.msra.mxu0 0.0
    %556 = vmatprep.subr.mxu0 0.0
    %557 = vmatpush1.msra.mxu0 0.0
    %558 = vmatprep.subr.mxu0 0.0
    %559 = vmatpush1.msra.mxu0 0.0
    %560 = vmatprep.subr.mxu0 0.0
    %561 = vmatpush1.msra.mxu0 0.0
    %562 = vmatprep.subr.mxu0 0.0
    %563 = vmatpush1.msra.mxu0 0.0
    %564 = vmatprep.subr.mxu0 0.0
    %565 = vmatpush1.msra.mxu0 0.0
    %566 = vmatprep.subr.mxu0 0.0
    %567 = vmatpush1.msra.mxu0 0.0
    %568 = vmatprep.subr.mxu0 0.0
    %569 = vmatpush1.msra.mxu0 0.0
    %570 = vmatprep.subr.mxu0 0.0
    %571 = vmatpush1.msra.mxu0 0.0
    %572 = vmatprep.subr.mxu0 0.0
    %573 = vmatpush1.msra.mxu0 0.0
    %574 = vmatprep.subr.mxu0 0.0
    %575 = vmatpush1.msra.mxu0 0.0
    %576 = vmatprep.subr.mxu0 0.0
    %577 = vmatpush1.msra.mxu0 0.0
    %578 = vmatprep.subr.mxu0 0.0
    %579 = vmatpush1.msra.mxu0 0.0
    %580 = vmatprep.subr.mxu0 0.0
    %581 = vmatpush1.msra.mxu0 0.0
    %582 = vmatprep.subr.mxu0 0.0
    %583 = vmatpush1.msra.mxu0 0.0
    %584 = vmatprep.subr.mxu0 0.0
    %585 = vmatpush1.msra.mxu0 0.0
    %586 = vmatprep.subr.mxu0 0.0
    %587 = vmatpush1.msra.mxu0 0.0
    %588 = vmatprep.subr.mxu0 0.0
    %589 = vmatpush1.msra.mxu0 0.0
    %590 = vmatprep.subr.mxu0 0.0
    %591 = vmatpush1.msra.mxu0 0.0
    %592 = vmatprep.subr.mxu0 0.0
    %593 = vmatpush1.msra.mxu0 0.0
    %594 = vmatprep.subr.mxu0 0.0
    %595 = vmatpush1.msra.mxu0 0.0
    %596 = vmatprep.subr.mxu0 0.0
    %597 = vmatpush1.msra.mxu0 0.0
    %598 = vmatprep.mubr.f32.mxu0 0.0
    %599 = vmatmul.mubr.f32.gmra.mrb[0].mxu0 %v372
    %v600 = vpop.f32.mrb[0].mxu0
    %v601 = vadd.f32 0.0, %v600
    %v602 = vpop.f32.mrb[0].mxu0
    %603 = vdwg.mxu0
    %605 = vset.pattern.permute.xlu0 0
    %606 = vperm.xlu0 %605, %v445
    %v607 = vpop.permute.xlu0 %606
    %v609 = vmul.f32 %v607, %v601
    %610 = vmatprep.subr.mxu0 0.0
    %611 = vmatpush1.msra.mxu0 %v609
    %612 = vmatprep.subr.mxu0 0.0
    %613 = vmatpush1.msra.mxu0 0.0
    %614 = vmatprep.subr.mxu0 0.0
    %615 = vmatpush1.msra.mxu0 0.0
    %616 = vmatprep.subr.mxu0 0.0
    %617 = vmatpush1.msra.mxu0 0.0
    %618 = vmatprep.subr.mxu0 0.0
    %619 = vmatpush1.msra.mxu0 0.0
    %620 = vmatprep.subr.mxu0 0.0
    %621 = vmatpush1.msra.mxu0 0.0
    %622 = vmatprep.subr.mxu0 0.0
    %623 = vmatpush1.msra.mxu0 0.0
    %624 = vmatprep.subr.mxu0 0.0
    %625 = vmatpush1.msra.mxu0 0.0
    %626 = vmatprep.subr.mxu0 0.0
    %627 = vmatpush1.msra.mxu0 0.0
    %628 = vmatprep.subr.mxu0 0.0
    %629 = vmatpush1.msra.mxu0 0.0
    %630 = vmatprep.subr.mxu0 0.0
    %631 = vmatpush1.msra.mxu0 0.0
    %632 = vmatprep.subr.mxu0 0.0
    %633 = vmatpush1.msra.mxu0 0.0
    %634 = vmatprep.subr.mxu0 0.0
    %635 = vmatpush1.msra.mxu0 0.0
    %636 = vmatprep.subr.mxu0 0.0
    %637 = vmatpush1.msra.mxu0 0.0
    %638 = vmatprep.subr.mxu0 0.0
    %639 = vmatpush1.msra.mxu0 0.0
    %640 = vmatprep.subr.mxu0 0.0
    %641 = vmatpush1.msra.mxu0 0.0
    %642 = vmatprep.subr.mxu0 0.0
    %643 = vmatpush1.msra.mxu0 0.0
    %644 = vmatprep.subr.mxu0 0.0
    %645 = vmatpush1.msra.mxu0 0.0
    %646 = vmatprep.subr.mxu0 0.0
    %647 = vmatpush1.msra.mxu0 0.0
    %648 = vmatprep.subr.mxu0 0.0
    %649 = vmatpush1.msra.mxu0 0.0
    %650 = vmatprep.subr.mxu0 0.0
    %651 = vmatpush1.msra.mxu0 0.0
    %652 = vmatprep.subr.mxu0 0.0
    %653 = vmatpush1.msra.mxu0 0.0
    %654 = vmatprep.subr.mxu0 0.0
    %655 = vmatpush1.msra.mxu0 0.0
    %656 = vmatprep.subr.mxu0 0.0
    %657 = vmatpush1.msra.mxu0 0.0
    %658 = vmatprep.subr.mxu0 0.0
    %659 = vmatpush1.msra.mxu0 0.0
    %660 = vmatprep.subr.mxu0 0.0
    %661 = vmatpush1.msra.mxu0 0.0
    %662 = vmatprep.subr.mxu0 0.0
    %663 = vmatpush1.msra.mxu0 0.0
    %664 = vmatprep.subr.mxu0 0.0
    %665 = vmatpush1.msra.mxu0 0.0
    %666 = vmatprep.subr.mxu0 0.0
    %667 = vmatpush1.msra.mxu0 0.0
    %668 = vmatprep.subr.mxu0 0.0
    %669 = vmatpush1.msra.mxu0 0.0
    %670 = vmatprep.subr.mxu0 0.0
    %671 = vmatpush1.msra.mxu0 0.0
    %672 = vmatprep.subr.mxu0 0.0
    %673 = vmatpush1.msra.mxu0 0.0
    %674 = vmatprep.mubr.f32.mxu0 0.0
    %675 = vmatmul.mubr.f32.gmra.mrb[0].mxu0 %v372
    %v676 = vpop.f32.mrb[0].mxu0
    %v677 = vadd.f32 0.0, %v676
    %v678 = vpop.f32.mrb[0].mxu0
    %679 = vdwg.mxu0
    %680 = vmatprep.subr.mxu0 0.0
    %681 = vmatpush1.msra.mxu0 %v677
    %682 = vmatprep.subr.mxu0 0.0
    %683 = vmatpush1.msra.mxu0 0.0
    %684 = vmatprep.subr.mxu0 0.0
    %685 = vmatpush1.msra.mxu0 0.0
    %686 = vmatprep.subr.mxu0 0.0
    %687 = vmatpush1.msra.mxu0 0.0
    %688 = vmatprep.subr.mxu0 0.0
    %689 = vmatpush1.msra.mxu0 0.0
    %690 = vmatprep.subr.mxu0 0.0
    %691 = vmatpush1.msra.mxu0 0.0
    %692 = vmatprep.subr.mxu0 0.0
    %693 = vmatpush1.msra.mxu0 0.0
    %694 = vmatprep.subr.mxu0 0.0
    %695 = vmatpush1.msra.mxu0 0.0
    %696 = vmatprep.subr.mxu0 0.0
    %697 = vmatpush1.msra.mxu0 0.0
    %698 = vmatprep.subr.mxu0 0.0
    %699 = vmatpush1.msra.mxu0 0.0
    %700 = vmatprep.subr.mxu0 0.0
    %701 = vmatpush1.msra.mxu0 0.0
    %702 = vmatprep.subr.mxu0 0.0
    %703 = vmatpush1.msra.mxu0 0.0
    %704 = vmatprep.subr.mxu0 0.0
    %705 = vmatpush1.msra.mxu0 0.0
    %706 = vmatprep.subr.mxu0 0.0
    %707 = vmatpush1.msra.mxu0 0.0
    %708 = vmatprep.subr.mxu0 0.0
    %709 = vmatpush1.msra.mxu0 0.0
    %710 = vmatprep.subr.mxu0 0.0
    %711 = vmatpush1.msra.mxu0 0.0
    %712 = vmatprep.subr.mxu0 0.0
    %713 = vmatpush1.msra.mxu0 0.0
    %714 = vmatprep.subr.mxu0 0.0
    %715 = vmatpush1.msra.mxu0 0.0
    %716 = vmatprep.subr.mxu0 0.0
    %717 = vmatpush1.msra.mxu0 0.0
    %718 = vmatprep.subr.mxu0 0.0
    %719 = vmatpush1.msra.mxu0 0.0
    %720 = vmatprep.subr.mxu0 0.0
    %721 = vmatpush1.msra.mxu0 0.0
    %722 = vmatprep.subr.mxu0 0.0
    %723 = vmatpush1.msra.mxu0 0.0
    %724 = vmatprep.subr.mxu0 0.0
    %725 = vmatpush1.msra.mxu0 0.0
    %726 = vmatprep.subr.mxu0 0.0
    %727 = vmatpush1.msra.mxu0 0.0
    %728 = vmatprep.subr.mxu0 0.0
    %729 = vmatpush1.msra.mxu0 0.0
    %730 = vmatprep.subr.mxu0 0.0
    %731 = vmatpush1.msra.mxu0 0.0
    %732 = vmatprep.subr.mxu0 0.0
    %733 = vmatpush1.msra.mxu0 0.0
    %734 = vmatprep.subr.mxu0 0.0
    %735 = vmatpush1.msra.mxu0 0.0
    %736 = vmatprep.subr.mxu0 0.0
    %737 = vmatpush1.msra.mxu0 0.0
    %738 = vmatprep.subr.mxu0 0.0
    %739 = vmatpush1.msra.mxu0 0.0
    %740 = vmatprep.subr.mxu0 0.0
    %741 = vmatpush1.msra.mxu0 0.0
    %742 = vmatprep.subr.mxu0 0.0
    %743 = vmatpush1.msra.mxu0 0.0
    %744 = vmatprep.mubr.f32.mxu0 0.0
    %745 = vmatmul.mubr.f32.gmra.mrb[0].mxu0 %v282
    %v746 = vpop.f32.mrb[0].mxu0
    %v747 = vadd.f32 0.0, %v746
    %v748 = vpop.f32.mrb[0].mxu0
    %749 = vmatprep.mubr.f32.mxu0 0.0
    %750 = vmatmul.mubr.f32.gmra.mrb[0].mxu0 %v285
    %v751 = vpop.f32.mrb[0].mxu0
    %v752 = vadd.f32 0.0, %v751
    %v753 = vpop.f32.mrb[0].mxu0
    %754 = vdwg.mxu0
    %755 = vmatprep.subr.mxu0 0.0
    %756 = vmatpush1.msra.mxu0 %v533
    %757 = vmatprep.subr.mxu0 0.0
    %758 = vmatpush1.msra.mxu0 0.0
    %759 = vmatprep.subr.mxu0 0.0
    %760 = vmatpush1.msra.mxu0 0.0
    %761 = vmatprep.subr.mxu0 0.0
    %762 = vmatpush1.msra.mxu0 0.0
    %763 = vmatprep.subr.mxu0 0.0
    %764 = vmatpush1.msra.mxu0 0.0
    %765 = vmatprep.subr.mxu0 0.0
    %766 = vmatpush1.msra.mxu0 0.0
    %767 = vmatprep.subr.mxu0 0.0
    %768 = vmatpush1.msra.mxu0 0.0
    %769 = vmatprep.subr.mxu0 0.0
    %770 = vmatpush1.msra.mxu0 0.0
    %771 = vmatprep.subr.mxu0 0.0
    %772 = vmatpush1.msra.mxu0 0.0
    %773 = vmatprep.subr.mxu0 0.0
    %774 = vmatpush1.msra.mxu0 0.0
    %775 = vmatprep.subr.mxu0 0.0
    %776 = vmatpush1.msra.mxu0 0.0
    %777 = vmatprep.subr.mxu0 0.0
    %778 = vmatpush1.msra.mxu0 0.0
    %779 = vmatprep.subr.mxu0 0.0
    %780 = vmatpush1.msra.mxu0 0.0
    %781 = vmatprep.subr.mxu0 0.0
    %782 = vmatpush1.msra.mxu0 0.0
    %783 = vmatprep.subr.mxu0 0.0
    %784 = vmatpush1.msra.mxu0 0.0
    %785 = vmatprep.subr.mxu0 0.0
    %786 = vmatpush1.msra.mxu0 0.0
    %787 = vmatprep.subr.mxu0 0.0
    %788 = vmatpush1.msra.mxu0 0.0
    %789 = vmatprep.subr.mxu0 0.0
    %790 = vmatpush1.msra.mxu0 0.0
    %791 = vmatprep.subr.mxu0 0.0
    %792 = vmatpush1.msra.mxu0 0.0
    %793 = vmatprep.subr.mxu0 0.0
    %794 = vmatpush1.msra.mxu0 0.0
    %795 = vmatprep.subr.mxu0 0.0
    %796 = vmatpush1.msra.mxu0 0.0
    %797 = vmatprep.subr.mxu0 0.0
    %798 = vmatpush1.msra.mxu0 0.0
    %799 = vmatprep.subr.mxu0 0.0
    %800 = vmatpush1.msra.mxu0 0.0
    %801 = vmatprep.subr.mxu0 0.0
    %802 = vmatpush1.msra.mxu0 0.0
    %803 = vmatprep.subr.mxu0 0.0
    %804 = vmatpush1.msra.mxu0 0.0
    %805 = vmatprep.subr.mxu0 0.0
    %806 = vmatpush1.msra.mxu0 0.0
    %807 = vmatprep.subr.mxu0 0.0
    %808 = vmatpush1.msra.mxu0 0.0
    %809 = vmatprep.subr.mxu0 0.0
    %810 = vmatpush1.msra.mxu0 0.0
    %811 = vmatprep.subr.mxu0 0.0
    %812 = vmatpush1.msra.mxu0 0.0
    %813 = vmatprep.subr.mxu0 0.0
    %814 = vmatpush1.msra.mxu0 0.0
    %815 = vmatprep.subr.mxu0 0.0
    %816 = vmatpush1.msra.mxu0 0.0
    %817 = vmatprep.subr.mxu0 0.0
    %818 = vmatpush1.msra.mxu0 0.0
    %819 = vmatprep.mubr.f32.mxu0 0.0
    %820 = vmatmul.mubr.f32.gmra.mrb[0].mxu0 %v282
    %v821 = vpop.f32.mrb[0].mxu0
    %v822 = vadd.f32 %v747, %v821
    %v823 = vpop.f32.mrb[0].mxu0
    %824 = vmatprep.mubr.f32.mxu0 0.0
    %825 = vmatmul.mubr.f32.gmra.mrb[0].mxu0 %v285
    %v826 = vpop.f32.mrb[0].mxu0
    %v827 = vadd.f32 %v752, %v826
    %v828 = vpop.f32.mrb[0].mxu0
    %829 = vdwg.mxu0
    %v830 = vmul.f32 %v449, %v822
    %v831 = vmul.f32 %v454, %v827
    %v832 = vadd.f32 %v830, %v41
    %v833 = vadd.f32 %v831, %v42
    %v835 = vlaneseq
    %v836 = vshrl.u32 %v835, 7
    %v837 = vsub.s32 0, %v836
    %v838 = vrot.slane %v60, %v837
    %840 = vmatprep.subr.mxu0 0.0
    %841 = vmatpush1.msra.mxu0 %v44
    %842 = vmatprep.subr.mxu0 0.0
    %843 = vmatpush1.msra.mxu0 %v45
    %844 = vmatprep.subr.mxu0 0.0
    %845 = vmatpush1.msra.mxu0 %v46
    %846 = vmatprep.subr.mxu0 0.0
    %847 = vmatpush1.msra.mxu0 %v47
    %848 = vmatprep.subr.mxu0 0.0
    %849 = vmatpush1.msra.mxu0 %v48
    %850 = vmatprep.subr.mxu0 0.0
    %851 = vmatpush1.msra.mxu0 %v49
    %852 = vmatprep.subr.mxu0 0.0
    %853 = vmatpush1.msra.mxu0 %v50
    %854 = vmatprep.subr.mxu0 0.0
    %855 = vmatpush1.msra.mxu0 %v51
    %856 = vmatprep.subr.mxu0 0.0
    %857 = vmatpush1.msra.mxu0 %v52
    %858 = vmatprep.subr.mxu0 0.0
    %859 = vmatpush1.msra.mxu0 %v53
    %860 = vmatprep.subr.mxu0 0.0
    %861 = vmatpush1.msra.mxu0 %v54
    %862 = vmatprep.subr.mxu0 0.0
    %863 = vmatpush1.msra.mxu0 %v55
    %864 = vmatprep.subr.mxu0 0.0
    %865 = vmatpush1.msra.mxu0 %v56
    %866 = vmatprep.subr.mxu0 0.0
    %867 = vmatpush1.msra.mxu0 %v57
    %868 = vmatprep.subr.mxu0 0.0
    %869 = vmatpush1.msra.mxu0 %v58
    %870 = vmatprep.subr.mxu0 0.0
    %871 = vmatpush1.msra.mxu0 %v59
    %872 = vmatprep.subr.mxu0 0.0
    %873 = vmatpush1.msra.mxu0 0.0
    %874 = vmatprep.subr.mxu0 0.0
    %875 = vmatpush1.msra.mxu0 0.0
    %876 = vmatprep.subr.mxu0 0.0
    %877 = vmatpush1.msra.mxu0 0.0
    %878 = vmatprep.subr.mxu0 0.0
    %879 = vmatpush1.msra.mxu0 0.0
    %880 = vmatprep.subr.mxu0 0.0
    %881 = vmatpush1.msra.mxu0 0.0
    %882 = vmatprep.subr.mxu0 0.0
    %883 = vmatpush1.msra.mxu0 0.0
    %884 = vmatprep.subr.mxu0 0.0
    %885 = vmatpush1.msra.mxu0 0.0
    %886 = vmatprep.subr.mxu0 0.0
    %887 = vmatpush1.msra.mxu0 0.0
    %888 = vmatprep.subr.mxu0 0.0
    %889 = vmatpush1.msra.mxu0 0.0
    %890 = vmatprep.subr.mxu0 0.0
    %891 = vmatpush1.msra.mxu0 0.0
    %892 = vmatprep.subr.mxu0 0.0
    %893 = vmatpush1.msra.mxu0 0.0
    %894 = vmatprep.subr.mxu0 0.0
    %895 = vmatpush1.msra.mxu0 0.0
    %896 = vmatprep.subr.mxu0 0.0
    %897 = vmatpush1.msra.mxu0 0.0
    %898 = vmatprep.subr.mxu0 0.0
    %899 = vmatpush1.msra.mxu0 0.0
    %900 = vmatprep.subr.mxu0 0.0
    %901 = vmatpush1.msra.mxu0 0.0
    %902 = vmatprep.subr.mxu0 0.0
    %903 = vmatpush1.msra.mxu0 0.0
    %904 = vmatprep.mubr.f32.mxu0 0.0
    %905 = vmatmul.mubr.f32.gmra.mrb[0].mxu0 %v832
    %v906 = vpop.f32.mrb[0].mxu0
    %v907 = vadd.f32 %v838, %v906
    %v908 = vpop.f32.mrb[0].mxu0
    %909 = vmatprep.mubr.f32.mxu0 0.0
    %910 = vmatmul.mubr.f32.gmra.mrb[0].mxu0 %v833
    %v911 = vpop.f32.mrb[0].mxu0
    %v912 = vadd.f32 %v838, %v911
    %v913 = vpop.f32.mrb[0].mxu0
    %914 = vdwg.mxu0
    %915 = vst [vmem:[#allocation5] sm:$0xff] %v907
    %916 = vst [vmem:[#allocation5 + $0x8] sm:$0xff] %v912
    %v917 = vsel %vm78, %v161, 0.0
    %918 = vadd.xlane.f32.xlu0 %v917
    %v919 = vpop.xlane.xlu0 %918
    %v920 = vsel %vm78, %v164, 0.0
    %921 = vadd.xlane.f32.xlu0 %v920
    %v922 = vpop.xlane.xlu0 %921
    %923 = vmatprep.subr.mxu0 0.0
    %924 = vmatpush1.msra.mxu0 %v919
    %925 = vmatprep.subr.mxu0 0.0
    %926 = vmatpush1.msra.mxu0 %v922
    %927 = vmatprep.subr.mxu0 0.0
    %928 = vmatpush1.msra.mxu0 0.0
    %929 = vmatprep.subr.mxu0 0.0
    %930 = vmatpush1.msra.mxu0 0.0
    %931 = vmatprep.subr.mxu0 0.0
    %932 = vmatpush1.msra.mxu0 0.0
    %933 = vmatprep.subr.mxu0 0.0
    %934 = vmatpush1.msra.mxu0 0.0
    %935 = vmatprep.subr.mxu0 0.0
    %936 = vmatpush1.msra.mxu0 0.0
    %937 = vmatprep.subr.mxu0 0.0
    %938 = vmatpush1.msra.mxu0 0.0
    %939 = vmatprep.subr.mxu0 0.0
    %940 = vmatpush1.msra.mxu0 0.0
    %941 = vmatprep.subr.mxu0 0.0
    %942 = vmatpush1.msra.mxu0 0.0
    %943 = vmatprep.subr.mxu0 0.0
    %944 = vmatpush1.msra.mxu0 0.0
    %945 = vmatprep.subr.mxu0 0.0
    %946 = vmatpush1.msra.mxu0 0.0
    %947 = vmatprep.subr.mxu0 0.0
    %948 = vmatpush1.msra.mxu0 0.0
    %949 = vmatprep.subr.mxu0 0.0
    %950 = vmatpush1.msra.mxu0 0.0
    %951 = vmatprep.subr.mxu0 0.0
    %952 = vmatpush1.msra.mxu0 0.0
    %953 = vmatprep.subr.mxu0 0.0
    %954 = vmatpush1.msra.mxu0 0.0
    %955 = vmatprep.subr.mxu0 0.0
    %956 = vmatpush1.msra.mxu0 0.0
    %957 = vmatprep.subr.mxu0 0.0
    %958 = vmatpush1.msra.mxu0 0.0
    %959 = vmatprep.subr.mxu0 0.0
    %960 = vmatpush1.msra.mxu0 0.0
    %961 = vmatprep.subr.mxu0 0.0
    %962 = vmatpush1.msra.mxu0 0.0
    %963 = vmatprep.subr.mxu0 0.0
    %964 = vmatpush1.msra.mxu0 0.0
    %965 = vmatprep.subr.mxu0 0.0
    %966 = vmatpush1.msra.mxu0 0.0
    %967 = vmatprep.subr.mxu0 0.0
    %968 = vmatpush1.msra.mxu0 0.0
    %969 = vmatprep.subr.mxu0 0.0
    %970 = vmatpush1.msra.mxu0 0.0
    %971 = vmatprep.subr.mxu0 0.0
    %972 = vmatpush1.msra.mxu0 0.0
    %973 = vmatprep.subr.mxu0 0.0
    %974 = vmatpush1.msra.mxu0 0.0
    %975 = vmatprep.subr.mxu0 0.0
    %976 = vmatpush1.msra.mxu0 0.0
    %977 = vmatprep.subr.mxu0 0.0
    %978 = vmatpush1.msra.mxu0 0.0
    %979 = vmatprep.subr.mxu0 0.0
    %980 = vmatpush1.msra.mxu0 0.0
    %981 = vmatprep.subr.mxu0 0.0
    %982 = vmatpush1.msra.mxu0 0.0
    %983 = vmatprep.subr.mxu0 0.0
    %984 = vmatpush1.msra.mxu0 0.0
    %985 = vmatprep.subr.mxu0 0.0
    %986 = vmatpush1.msra.mxu0 0.0
    %987 = vmatprep.mubr.f32.mxu0 0.0
    %988 = vmatmul.mubr.f32.gmra.mrb[0].mxu0 %v206
    %v989 = vpop.f32.mrb[0].mxu0
    %v990 = vadd.f32 0.0, %v989
    %v991 = vpop.f32.mrb[0].mxu0
    %992 = vdwg.mxu0
    %v993 = vadd.f32 %v275, %v990
    %v994 = vadd.f32 %v993, 1e-07
    %v995 = vrsqrt.pop %v994
    %v996 = vadd.f32 %v169, 1e-07
    %v997 = vadd.f32 %v172, 1e-07
    %v998 = vrcp.pop %v996
    %v999 = vmul.f32 1.0, %v998
    %v1000 = vrcp.pop %v997
    %v1001 = vmul.f32 1.0, %v1000
    %v1003 = vsel %vm78, %v161, 0
    %v1006 = vsel %vm78, %v164, 0
    %1008 = vmatprep.subr.mxu0 0.0
    %1009 = vmatpush1.msra.mxu0 %v169
    %1010 = vmatprep.subr.mxu0 0.0
    %1011 = vmatpush1.msra.mxu0 %v172
    %1012 = vmatprep.subr.mxu0 0.0
    %1013 = vmatpush1.msra.mxu0 0.0
    %1014 = vmatprep.subr.mxu0 0.0
    %1015 = vmatpush1.msra.mxu0 0.0
    %1016 = vmatprep.subr.mxu0 0.0
    %1017 = vmatpush1.msra.mxu0 0.0
    %1018 = vmatprep.subr.mxu0 0.0
    %1019 = vmatpush1.msra.mxu0 0.0
    %1020 = vmatprep.subr.mxu0 0.0
    %1021 = vmatpush1.msra.mxu0 0.0
    %1022 = vmatprep.subr.mxu0 0.0
    %1023 = vmatpush1.msra.mxu0 0.0
    %1024 = vmatprep.subr.mxu0 0.0
    %1025 = vmatpush1.msra.mxu0 0.0
    %1026 = vmatprep.subr.mxu0 0.0
    %1027 = vmatpush1.msra.mxu0 0.0
    %1028 = vmatprep.subr.mxu0 0.0
    %1029 = vmatpush1.msra.mxu0 0.0
    %1030 = vmatprep.subr.mxu0 0.0
    %1031 = vmatpush1.msra.mxu0 0.0
    %1032 = vmatprep.subr.mxu0 0.0
    %1033 = vmatpush1.msra.mxu0 0.0
    %1034 = vmatprep.subr.mxu0 0.0
    %1035 = vmatpush1.msra.mxu0 0.0
    %1036 = vmatprep.subr.mxu0 0.0
    %1037 = vmatpush1.msra.mxu0 0.0
    %1038 = vmatprep.subr.mxu0 0.0
    %1039 = vmatpush1.msra.mxu0 0.0
    %1040 = vmatprep.subr.mxu0 0.0
    %1041 = vmatpush1.msra.mxu0 0.0
    %1042 = vmatprep.subr.mxu0 0.0
    %1043 = vmatpush1.msra.mxu0 0.0
    %1044 = vmatprep.subr.mxu0 0.0
    %1045 = vmatpush1.msra.mxu0 0.0
    %1046 = vmatprep.subr.mxu0 0.0
    %1047 = vmatpush1.msra.mxu0 0.0
    %1048 = vmatprep.subr.mxu0 0.0
    %1049 = vmatpush1.msra.mxu0 0.0
    %1050 = vmatprep.subr.mxu0 0.0
    %1051 = vmatpush1.msra.mxu0 0.0
    %1052 = vmatprep.subr.mxu0 0.0
    %1053 = vmatpush1.msra.mxu0 0.0
    %1054 = vmatprep.subr.mxu0 0.0
    %1055 = vmatpush1.msra.mxu0 0.0
    %1056 = vmatprep.subr.mxu0 0.0
    %1057 = vmatpush1.msra.mxu0 0.0
    %1058 = vmatprep.subr.mxu0 0.0
    %1059 = vmatpush1.msra.mxu0 0.0
    %1060 = vmatprep.subr.mxu0 0.0
    %1061 = vmatpush1.msra.mxu0 0.0
    %1062 = vmatprep.subr.mxu0 0.0
    %1063 = vmatpush1.msra.mxu0 0.0
    %1064 = vmatprep.subr.mxu0 0.0
    %1065 = vmatpush1.msra.mxu0 0.0
    %1066 = vmatprep.subr.mxu0 0.0
    %1067 = vmatpush1.msra.mxu0 0.0
    %1068 = vmatprep.subr.mxu0 0.0
    %1069 = vmatpush1.msra.mxu0 0.0
    %1070 = vmatprep.subr.mxu0 0.0
    %1071 = vmatpush1.msra.mxu0 0.0
    %1072 = vmatprep.mubr.f32.mxu0 0.0
    %1073 = vmatmul.mubr.f32.gmra.mrb[0].mxu0 %v1003
    %v1074 = vpop.f32.mrb[0].mxu0
    %v1075 = vadd.f32 1e-07, %v1074
    %v1076 = vpop.f32.mrb[0].mxu0
    %1077 = vmatprep.mubr.f32.mxu0 0.0
    %1078 = vmatmul.mubr.f32.gmra.mrb[0].mxu0 %v1006
    %v1079 = vpop.f32.mrb[0].mxu0
    %v1080 = vadd.f32 1e-07, %v1079
    %v1081 = vpop.f32.mrb[0].mxu0
    %1082 = vdwg.mxu0
    %v1083 = vrcp.pop %v1075
    %v1084 = vmul.f32 1.0, %v1083
    %v1085 = vrcp.pop %v1080
    %v1086 = vmul.f32 1.0, %v1085
    %1088 = vset.pattern.permute.xlu0 0
    %1089 = vperm.xlu0 %1088, %v995
    %v1090 = vpop.permute.xlu0 %1089
    %v1092 = vmul.f32 %v1090, %v43
    %1093 = vmatprep.subr.mxu0 0.0
    %1094 = vmatpush1.msra.mxu0 %v1092
    %1095 = vmatprep.subr.mxu0 0.0
    %1096 = vmatpush1.msra.mxu0 0.0
    %1097 = vmatprep.subr.mxu0 0.0
    %1098 = vmatpush1.msra.mxu0 0.0
    %1099 = vmatprep.subr.mxu0 0.0
    %1100 = vmatpush1.msra.mxu0 0.0
    %1101 = vmatprep.subr.mxu0 0.0
    %1102 = vmatpush1.msra.mxu0 0.0
    %1103 = vmatprep.subr.mxu0 0.0
    %1104 = vmatpush1.msra.mxu0 0.0
    %1105 = vmatprep.subr.mxu0 0.0
    %1106 = vmatpush1.msra.mxu0 0.0
    %1107 = vmatprep.subr.mxu0 0.0
    %1108 = vmatpush1.msra.mxu0 0.0
    %1109 = vmatprep.subr.mxu0 0.0
    %1110 = vmatpush1.msra.mxu0 0.0
    %1111 = vmatprep.subr.mxu0 0.0
    %1112 = vmatpush1.msra.mxu0 0.0
    %1113 = vmatprep.subr.mxu0 0.0
    %1114 = vmatpush1.msra.mxu0 0.0
    %1115 = vmatprep.subr.mxu0 0.0
    %1116 = vmatpush1.msra.mxu0 0.0
    %1117 = vmatprep.subr.mxu0 0.0
    %1118 = vmatpush1.msra.mxu0 0.0
    %1119 = vmatprep.subr.mxu0 0.0
    %1120 = vmatpush1.msra.mxu0 0.0
    %1121 = vmatprep.subr.mxu0 0.0
    %1122 = vmatpush1.msra.mxu0 0.0
    %1123 = vmatprep.subr.mxu0 0.0
    %1124 = vmatpush1.msra.mxu0 0.0
    %1125 = vmatprep.subr.mxu0 0.0
    %1126 = vmatpush1.msra.mxu0 0.0
    %1127 = vmatprep.subr.mxu0 0.0
    %1128 = vmatpush1.msra.mxu0 0.0
    %1129 = vmatprep.subr.mxu0 0.0
    %1130 = vmatpush1.msra.mxu0 0.0
    %1131 = vmatprep.subr.mxu0 0.0
    %1132 = vmatpush1.msra.mxu0 0.0
    %1133 = vmatprep.subr.mxu0 0.0
    %1134 = vmatpush1.msra.mxu0 0.0
    %1135 = vmatprep.subr.mxu0 0.0
    %1136 = vmatpush1.msra.mxu0 0.0
    %1137 = vmatprep.subr.mxu0 0.0
    %1138 = vmatpush1.msra.mxu0 0.0
    %1139 = vmatprep.subr.mxu0 0.0
    %1140 = vmatpush1.msra.mxu0 0.0
    %1141 = vmatprep.subr.mxu0 0.0
    %1142 = vmatpush1.msra.mxu0 0.0
    %1143 = vmatprep.subr.mxu0 0.0
    %1144 = vmatpush1.msra.mxu0 0.0
    %1145 = vmatprep.subr.mxu0 0.0
    %1146 = vmatpush1.msra.mxu0 0.0
    %1147 = vmatprep.subr.mxu0 0.0
    %1148 = vmatpush1.msra.mxu0 0.0
    %1149 = vmatprep.subr.mxu0 0.0
    %1150 = vmatpush1.msra.mxu0 0.0
    %1151 = vmatprep.subr.mxu0 0.0
    %1152 = vmatpush1.msra.mxu0 0.0
    %1153 = vmatprep.subr.mxu0 0.0
    %1154 = vmatpush1.msra.mxu0 0.0
    %1155 = vmatprep.subr.mxu0 0.0
    %1156 = vmatpush1.msra.mxu0 0.0
    %1157 = vmatprep.mubr.f32.mxu0 0.0
    %1158 = vmatmul.mubr.f32.gmra.mrb[0].mxu0 %v282
    %v1159 = vpop.f32.mrb[0].mxu0
    %v1160 = vadd.f32 0.0, %v1159
    %v1161 = vpop.f32.mrb[0].mxu0
    %1162 = vmatprep.mubr.f32.mxu0 0.0
    %1163 = vmatmul.mubr.f32.gmra.mrb[0].mxu0 %v285
    %v1164 = vpop.f32.mrb[0].mxu0
    %v1165 = vadd.f32 0.0, %v1164
    %v1166 = vpop.f32.mrb[0].mxu0
    %1167 = vdwg.mxu0
    %v1168 = vmul.f32 %v999, %v1160
    %v1169 = vmul.f32 %v1001, %v1165
    %1170 = vmatprep.subr.mxu0 0.0
    %1171 = vmatpush1.msra.mxu0 %v1160
    %1172 = vmatprep.subr.mxu0 0.0
    %1173 = vmatpush1.msra.mxu0 %v1165
    %1174 = vmatprep.subr.mxu0 0.0
    %1175 = vmatpush1.msra.mxu0 0.0
    %1176 = vmatprep.subr.mxu0 0.0
    %1177 = vmatpush1.msra.mxu0 0.0
    %1178 = vmatprep.subr.mxu0 0.0
    %1179 = vmatpush1.msra.mxu0 0.0
    %1180 = vmatprep.subr.mxu0 0.0
    %1181 = vmatpush1.msra.mxu0 0.0
    %1182 = vmatprep.subr.mxu0 0.0
    %1183 = vmatpush1.msra.mxu0 0.0
    %1184 = vmatprep.subr.mxu0 0.0
    %1185 = vmatpush1.msra.mxu0 0.0
    %1186 = vmatprep.subr.mxu0 0.0
    %1187 = vmatpush1.msra.mxu0 0.0
    %1188 = vmatprep.subr.mxu0 0.0
    %1189 = vmatpush1.msra.mxu0 0.0
    %1190 = vmatprep.subr.mxu0 0.0
    %1191 = vmatpush1.msra.mxu0 0.0
    %1192 = vmatprep.subr.mxu0 0.0
    %1193 = vmatpush1.msra.mxu0 0.0
    %1194 = vmatprep.subr.mxu0 0.0
    %1195 = vmatpush1.msra.mxu0 0.0
    %1196 = vmatprep.subr.mxu0 0.0
    %1197 = vmatpush1.msra.mxu0 0.0
    %1198 = vmatprep.subr.mxu0 0.0
    %1199 = vmatpush1.msra.mxu0 0.0
    %1200 = vmatprep.subr.mxu0 0.0
    %1201 = vmatpush1.msra.mxu0 0.0
    %1202 = vmatprep.subr.mxu0 0.0
    %1203 = vmatpush1.msra.mxu0 0.0
    %1204 = vmatprep.subr.mxu0 0.0
    %1205 = vmatpush1.msra.mxu0 0.0
    %1206 = vmatprep.subr.mxu0 0.0
    %1207 = vmatpush1.msra.mxu0 0.0
    %1208 = vmatprep.subr.mxu0 0.0
    %1209 = vmatpush1.msra.mxu0 0.0
    %1210 = vmatprep.subr.mxu0 0.0
    %1211 = vmatpush1.msra.mxu0 0.0
    %1212 = vmatprep.subr.mxu0 0.0
    %1213 = vmatpush1.msra.mxu0 0.0
    %1214 = vmatprep.subr.mxu0 0.0
    %1215 = vmatpush1.msra.mxu0 0.0
    %1216 = vmatprep.subr.mxu0 0.0
    %1217 = vmatpush1.msra.mxu0 0.0
    %1218 = vmatprep.subr.mxu0 0.0
    %1219 = vmatpush1.msra.mxu0 0.0
    %1220 = vmatprep.subr.mxu0 0.0
    %1221 = vmatpush1.msra.mxu0 0.0
    %1222 = vmatprep.subr.mxu0 0.0
    %1223 = vmatpush1.msra.mxu0 0.0
    %1224 = vmatprep.subr.mxu0 0.0
    %1225 = vmatpush1.msra.mxu0 0.0
    %1226 = vmatprep.subr.mxu0 0.0
    %1227 = vmatpush1.msra.mxu0 0.0
    %1228 = vmatprep.subr.mxu0 0.0
    %1229 = vmatpush1.msra.mxu0 0.0
    %1230 = vmatprep.subr.mxu0 0.0
    %1231 = vmatpush1.msra.mxu0 0.0
    %1232 = vmatprep.subr.mxu0 0.0
    %1233 = vmatpush1.msra.mxu0 0.0
    %1234 = vmatprep.mubr.f32.mxu0 0.0
    %1235 = vmatmul.mubr.f32.gmra.mrb[0].mxu0 %v1003
    %v1236 = vpop.f32.mrb[0].mxu0
    %v1237 = vadd.f32 0.0, %v1236
    %v1238 = vpop.f32.mrb[0].mxu0
    %1239 = vmatprep.mubr.f32.mxu0 0.0
    %1240 = vmatmul.mubr.f32.gmra.mrb[0].mxu0 %v1006
    %v1241 = vpop.f32.mrb[0].mxu0
    %v1242 = vadd.f32 0.0, %v1241
    %v1243 = vpop.f32.mrb[0].mxu0
    %1244 = vdwg.mxu0
    %1246 = vset.pattern.permute.xlu0 0
    %1247 = vperm.xlu0 %1246, %v1084
    %v1248 = vpop.permute.xlu0 %1247
    %1251 = vset.pattern.permute.xlu0 0
    %1252 = vperm.xlu0 %1251, %v1086
    %v1253 = vpop.permute.xlu0 %1252
    %v1255 = vmul.f32 %v1248, %v1237
    %v1256 = vmul.f32 %v1253, %v1242
    %1257 = vmatprep.subr.mxu0 0.0
    %1258 = vmatpush1.msra.mxu0 %v1255
    %1259 = vmatprep.subr.mxu0 0.0
    %1260 = vmatpush1.msra.mxu0 %v1256
    %1261 = vmatprep.subr.mxu0 0.0
    %1262 = vmatpush1.msra.mxu0 0.0
    %1263 = vmatprep.subr.mxu0 0.0
    %1264 = vmatpush1.msra.mxu0 0.0
    %1265 = vmatprep.subr.mxu0 0.0
    %1266 = vmatpush1.msra.mxu0 0.0
    %1267 = vmatprep.subr.mxu0 0.0
    %1268 = vmatpush1.msra.mxu0 0.0
    %1269 = vmatprep.subr.mxu0 0.0
    %1270 = vmatpush1.msra.mxu0 0.0
    %1271 = vmatprep.subr.mxu0 0.0
    %1272 = vmatpush1.msra.mxu0 0.0
    %1273 = vmatprep.subr.mxu0 0.0
    %1274 = vmatpush1.msra.mxu0 0.0
    %1275 = vmatprep.subr.mxu0 0.0
    %1276 = vmatpush1.msra.mxu0 0.0
    %1277 = vmatprep.subr.mxu0 0.0
    %1278 = vmatpush1.msra.mxu0 0.0
    %1279 = vmatprep.subr.mxu0 0.0
    %1280 = vmatpush1.msra.mxu0 0.0
    %1281 = vmatprep.subr.mxu0 0.0
    %1282 = vmatpush1.msra.mxu0 0.0
    %1283 = vmatprep.subr.mxu0 0.0
    %1284 = vmatpush1.msra.mxu0 0.0
    %1285 = vmatprep.subr.mxu0 0.0
    %1286 = vmatpush1.msra.mxu0 0.0
    %1287 = vmatprep.subr.mxu0 0.0
    %1288 = vmatpush1.msra.mxu0 0.0
    %1289 = vmatprep.subr.mxu0 0.0
    %1290 = vmatpush1.msra.mxu0 0.0
    %1291 = vmatprep.subr.mxu0 0.0
    %1292 = vmatpush1.msra.mxu0 0.0
    %1293 = vmatprep.subr.mxu0 0.0
    %1294 = vmatpush1.msra.mxu0 0.0
    %1295 = vmatprep.subr.mxu0 0.0
    %1296 = vmatpush1.msra.mxu0 0.0
    %1297 = vmatprep.subr.mxu0 0.0
    %1298 = vmatpush1.msra.mxu0 0.0
    %1299 = vmatprep.subr.mxu0 0.0
    %1300 = vmatpush1.msra.mxu0 0.0
    %1301 = vmatprep.subr.mxu0 0.0
    %1302 = vmatpush1.msra.mxu0 0.0
    %1303 = vmatprep.subr.mxu0 0.0
    %1304 = vmatpush1.msra.mxu0 0.0
    %1305 = vmatprep.subr.mxu0 0.0
    %1306 = vmatpush1.msra.mxu0 0.0
    %1307 = vmatprep.subr.mxu0 0.0
    %1308 = vmatpush1.msra.mxu0 0.0
    %1309 = vmatprep.subr.mxu0 0.0
    %1310 = vmatpush1.msra.mxu0 0.0
    %1311 = vmatprep.subr.mxu0 0.0
    %1312 = vmatpush1.msra.mxu0 0.0
    %1313 = vmatprep.subr.mxu0 0.0
    %1314 = vmatpush1.msra.mxu0 0.0
    %1315 = vmatprep.subr.mxu0 0.0
    %1316 = vmatpush1.msra.mxu0 0.0
    %1317 = vmatprep.subr.mxu0 0.0
    %1318 = vmatpush1.msra.mxu0 0.0
    %1319 = vmatprep.subr.mxu0 0.0
    %1320 = vmatpush1.msra.mxu0 0.0
    %1321 = vmatprep.mubr.f32.mxu0 0.0
    %1322 = vmatmul.mubr.f32.gmra.mrb[0].mxu0 %v1003
    %v1323 = vpop.f32.mrb[0].mxu0
    %v1324 = vadd.f32 0.0, %v1323
    %v1325 = vpop.f32.mrb[0].mxu0
    %1326 = vmatprep.mubr.f32.mxu0 0.0
    %1327 = vmatmul.mubr.f32.gmra.mrb[0].mxu0 %v1006
    %v1328 = vpop.f32.mrb[0].mxu0
    %v1329 = vadd.f32 0.0, %v1328
    %v1330 = vpop.f32.mrb[0].mxu0
    %1331 = vdwg.mxu0
    %1332 = vmatprep.subr.mxu0 0.0
    %1333 = vmatpush1.msra.mxu0 %v1324
    %1334 = vmatprep.subr.mxu0 0.0
    %1335 = vmatpush1.msra.mxu0 %v1329
    %1336 = vmatprep.subr.mxu0 0.0
    %1337 = vmatpush1.msra.mxu0 0.0
    %1338 = vmatprep.subr.mxu0 0.0
    %1339 = vmatpush1.msra.mxu0 0.0
    %1340 = vmatprep.subr.mxu0 0.0
    %1341 = vmatpush1.msra.mxu0 0.0
    %1342 = vmatprep.subr.mxu0 0.0
    %1343 = vmatpush1.msra.mxu0 0.0
    %1344 = vmatprep.subr.mxu0 0.0
    %1345 = vmatpush1.msra.mxu0 0.0
    %1346 = vmatprep.subr.mxu0 0.0
    %1347 = vmatpush1.msra.mxu0 0.0
    %1348 = vmatprep.subr.mxu0 0.0
    %1349 = vmatpush1.msra.mxu0 0.0
    %1350 = vmatprep.subr.mxu0 0.0
    %1351 = vmatpush1.msra.mxu0 0.0
    %1352 = vmatprep.subr.mxu0 0.0
    %1353 = vmatpush1.msra.mxu0 0.0
    %1354 = vmatprep.subr.mxu0 0.0
    %1355 = vmatpush1.msra.mxu0 0.0
    %1356 = vmatprep.subr.mxu0 0.0
    %1357 = vmatpush1.msra.mxu0 0.0
    %1358 = vmatprep.subr.mxu0 0.0
    %1359 = vmatpush1.msra.mxu0 0.0
    %1360 = vmatprep.subr.mxu0 0.0
    %1361 = vmatpush1.msra.mxu0 0.0
    %1362 = vmatprep.subr.mxu0 0.0
    %1363 = vmatpush1.msra.mxu0 0.0
    %1364 = vmatprep.subr.mxu0 0.0
    %1365 = vmatpush1.msra.mxu0 0.0
    %1366 = vmatprep.subr.mxu0 0.0
    %1367 = vmatpush1.msra.mxu0 0.0
    %1368 = vmatprep.subr.mxu0 0.0
    %1369 = vmatpush1.msra.mxu0 0.0
    %1370 = vmatprep.subr.mxu0 0.0
    %1371 = vmatpush1.msra.mxu0 0.0
    %1372 = vmatprep.subr.mxu0 0.0
    %1373 = vmatpush1.msra.mxu0 0.0
    %1374 = vmatprep.subr.mxu0 0.0
    %1375 = vmatpush1.msra.mxu0 0.0
    %1376 = vmatprep.subr.mxu0 0.0
    %1377 = vmatpush1.msra.mxu0 0.0
    %1378 = vmatprep.subr.mxu0 0.0
    %1379 = vmatpush1.msra.mxu0 0.0
    %1380 = vmatprep.subr.mxu0 0.0
    %1381 = vmatpush1.msra.mxu0 0.0
    %1382 = vmatprep.subr.mxu0 0.0
    %1383 = vmatpush1.msra.mxu0 0.0
    %1384 = vmatprep.subr.mxu0 0.0
    %1385 = vmatpush1.msra.mxu0 0.0
    %1386 = vmatprep.subr.mxu0 0.0
    %1387 = vmatpush1.msra.mxu0 0.0
    %1388 = vmatprep.subr.mxu0 0.0
    %1389 = vmatpush1.msra.mxu0 0.0
    %1390 = vmatprep.subr.mxu0 0.0
    %1391 = vmatpush1.msra.mxu0 0.0
    %1392 = vmatprep.subr.mxu0 0.0
    %1393 = vmatpush1.msra.mxu0 0.0
    %1394 = vmatprep.subr.mxu0 0.0
    %1395 = vmatpush1.msra.mxu0 0.0
    %1396 = vmatprep.mubr.f32.mxu0 0.0
    %1397 = vmatmul.mubr.f32.gmra.mrb[0].mxu0 %v206
    %v1398 = vpop.f32.mrb[0].mxu0
    %v1399 = vadd.f32 0.0, %v1398
    %v1400 = vpop.f32.mrb[0].mxu0
    %1401 = vdwg.mxu0
    %1402 = vmatprep.subr.mxu0 0.0
    %1403 = vmatpush1.msra.mxu0 %v1168
    %1404 = vmatprep.subr.mxu0 0.0
    %1405 = vmatpush1.msra.mxu0 %v1169
    %1406 = vmatprep.subr.mxu0 0.0
    %1407 = vmatpush1.msra.mxu0 0.0
    %1408 = vmatprep.subr.mxu0 0.0
    %1409 = vmatpush1.msra.mxu0 0.0
    %1410 = vmatprep.subr.mxu0 0.0
    %1411 = vmatpush1.msra.mxu0 0.0
    %1412 = vmatprep.subr.mxu0 0.0
    %1413 = vmatpush1.msra.mxu0 0.0
    %1414 = vmatprep.subr.mxu0 0.0
    %1415 = vmatpush1.msra.mxu0 0.0
    %1416 = vmatprep.subr.mxu0 0.0
    %1417 = vmatpush1.msra.mxu0 0.0
    %1418 = vmatprep.subr.mxu0 0.0
    %1419 = vmatpush1.msra.mxu0 0.0
    %1420 = vmatprep.subr.mxu0 0.0
    %1421 = vmatpush1.msra.mxu0 0.0
    %1422 = vmatprep.subr.mxu0 0.0
    %1423 = vmatpush1.msra.mxu0 0.0
    %1424 = vmatprep.subr.mxu0 0.0
    %1425 = vmatpush1.msra.mxu0 0.0
    %1426 = vmatprep.subr.mxu0 0.0
    %1427 = vmatpush1.msra.mxu0 0.0
    %1428 = vmatprep.subr.mxu0 0.0
    %1429 = vmatpush1.msra.mxu0 0.0
    %1430 = vmatprep.subr.mxu0 0.0
    %1431 = vmatpush1.msra.mxu0 0.0
    %1432 = vmatprep.subr.mxu0 0.0
    %1433 = vmatpush1.msra.mxu0 0.0
    %1434 = vmatprep.subr.mxu0 0.0
    %1435 = vmatpush1.msra.mxu0 0.0
    %1436 = vmatprep.subr.mxu0 0.0
    %1437 = vmatpush1.msra.mxu0 0.0
    %1438 = vmatprep.subr.mxu0 0.0
    %1439 = vmatpush1.msra.mxu0 0.0
    %1440 = vmatprep.subr.mxu0 0.0
    %1441 = vmatpush1.msra.mxu0 0.0
    %1442 = vmatprep.subr.mxu0 0.0
    %1443 = vmatpush1.msra.mxu0 0.0
    %1444 = vmatprep.subr.mxu0 0.0
    %1445 = vmatpush1.msra.mxu0 0.0
    %1446 = vmatprep.subr.mxu0 0.0
    %1447 = vmatpush1.msra.mxu0 0.0
    %1448 = vmatprep.subr.mxu0 0.0
    %1449 = vmatpush1.msra.mxu0 0.0
    %1450 = vmatprep.subr.mxu0 0.0
    %1451 = vmatpush1.msra.mxu0 0.0
    %1452 = vmatprep.subr.mxu0 0.0
    %1453 = vmatpush1.msra.mxu0 0.0
    %1454 = vmatprep.subr.mxu0 0.0
    %1455 = vmatpush1.msra.mxu0 0.0
    %1456 = vmatprep.subr.mxu0 0.0
    %1457 = vmatpush1.msra.mxu0 0.0
    %1458 = vmatprep.subr.mxu0 0.0
    %1459 = vmatpush1.msra.mxu0 0.0
    %1460 = vmatprep.subr.mxu0 0.0
    %1461 = vmatpush1.msra.mxu0 0.0
    %1462 = vmatprep.subr.mxu0 0.0
    %1463 = vmatpush1.msra.mxu0 0.0
    %1464 = vmatprep.subr.mxu0 0.0
    %1465 = vmatpush1.msra.mxu0 0.0
    %1466 = vmatprep.mubr.f32.mxu0 0.0
    %1467 = vmatmul.mubr.f32.gmra.mrb[0].mxu0 %v206
    %v1468 = vpop.f32.mrb[0].mxu0
    %v1469 = vadd.f32 %v1399, %v1468
    %v1470 = vpop.f32.mrb[0].mxu0
    %1471 = vdwg.mxu0
    %v1472 = vmul.f32 %v1090, %v1469
    %v1473 = vadd.f32 %v1472, %v43
    %1474 = vmatprep.subr.mxu0 0.0
    %1475 = vmatpush1.msra.mxu0 %v44
    %1476 = vmatprep.subr.mxu0 0.0
    %1477 = vmatpush1.msra.mxu0 %v45
    %1478 = vmatprep.subr.mxu0 0.0
    %1479 = vmatpush1.msra.mxu0 %v46
    %1480 = vmatprep.subr.mxu0 0.0
    %1481 = vmatpush1.msra.mxu0 %v47
    %1482 = vmatprep.subr.mxu0 0.0
    %1483 = vmatpush1.msra.mxu0 %v48
    %1484 = vmatprep.subr.mxu0 0.0
    %1485 = vmatpush1.msra.mxu0 %v49
    %1486 = vmatprep.subr.mxu0 0.0
    %1487 = vmatpush1.msra.mxu0 %v50
    %1488 = vmatprep.subr.mxu0 0.0
    %1489 = vmatpush1.msra.mxu0 %v51
    %1490 = vmatprep.subr.mxu0 0.0
    %1491 = vmatpush1.msra.mxu0 %v52
    %1492 = vmatprep.subr.mxu0 0.0
    %1493 = vmatpush1.msra.mxu0 %v53
    %1494 = vmatprep.subr.mxu0 0.0
    %1495 = vmatpush1.msra.mxu0 %v54
    %1496 = vmatprep.subr.mxu0 0.0
    %1497 = vmatpush1.msra.mxu0 %v55
    %1498 = vmatprep.subr.mxu0 0.0
    %1499 = vmatpush1.msra.mxu0 %v56
    %1500 = vmatprep.subr.mxu0 0.0
    %1501 = vmatpush1.msra.mxu0 %v57
    %1502 = vmatprep.subr.mxu0 0.0
    %1503 = vmatpush1.msra.mxu0 %v58
    %1504 = vmatprep.subr.mxu0 0.0
    %1505 = vmatpush1.msra.mxu0 %v59
    %1506 = vmatprep.subr.mxu0 0.0
    %1507 = vmatpush1.msra.mxu0 0.0
    %1508 = vmatprep.subr.mxu0 0.0
    %1509 = vmatpush1.msra.mxu0 0.0
    %1510 = vmatprep.subr.mxu0 0.0
    %1511 = vmatpush1.msra.mxu0 0.0
    %1512 = vmatprep.subr.mxu0 0.0
    %1513 = vmatpush1.msra.mxu0 0.0
    %1514 = vmatprep.subr.mxu0 0.0
    %1515 = vmatpush1.msra.mxu0 0.0
    %1516 = vmatprep.subr.mxu0 0.0
    %1517 = vmatpush1.msra.mxu0 0.0
    %1518 = vmatprep.subr.mxu0 0.0
    %1519 = vmatpush1.msra.mxu0 0.0
    %1520 = vmatprep.subr.mxu0 0.0
    %1521 = vmatpush1.msra.mxu0 0.0
    %1522 = vmatprep.subr.mxu0 0.0
    %1523 = vmatpush1.msra.mxu0 0.0
    %1524 = vmatprep.subr.mxu0 0.0
    %1525 = vmatpush1.msra.mxu0 0.0
    %1526 = vmatprep.subr.mxu0 0.0
    %1527 = vmatpush1.msra.mxu0 0.0
    %1528 = vmatprep.subr.mxu0 0.0
    %1529 = vmatpush1.msra.mxu0 0.0
    %1530 = vmatprep.subr.mxu0 0.0
    %1531 = vmatpush1.msra.mxu0 0.0
    %1532 = vmatprep.subr.mxu0 0.0
    %1533 = vmatpush1.msra.mxu0 0.0
    %1534 = vmatprep.subr.mxu0 0.0
    %1535 = vmatpush1.msra.mxu0 0.0
    %1536 = vmatprep.subr.mxu0 0.0
    %1537 = vmatpush1.msra.mxu0 0.0
    %1538 = vmatprep.mubr.f32.mxu0 0.0
    %1539 = vmatmul.mubr.f32.gmra.mrb[0].mxu0 %v1473
    %v1540 = vpop.f32.mrb[0].mxu0
    %v1541 = vadd.f32 %v838, %v1540
    %v1542 = vpop.f32.mrb[0].mxu0
    %1543 = vdwg.mxu0
    %1544 = vst [vmem:[#allocation6] sm:$0xff] %v1541
    // Predicated region
    $region26: #{tpu_custom_call.1} parent=1 // pred_check
      _
    $region27: #{tpu_custom_call.1} parent=1 // pred_check_branch
      %1546 = sbr.rel (0) target = $region29
    $region28: #{tpu_custom_call.1} parent=1 // pred_region
      %s1548 = ssub.s32 256, 256
      %1549 = vsyncadd [#allocation4], %s1548
      %s1550 = sshll.u32 [#allocation5], 4
      %s1551 = int_to_ptr.vmem [resolvable:$true] %s1550
      %1556 = dma.vmem_to_hbm [thread:$0]  %s1551, 256, %s5, [#allocation4], 128, 128, 8
    $region29: #{tpu_custom_call.1} parent=1 // pred_fallthru
      _
    // Predicated region
    $region30: #{tpu_custom_call.1} parent=1 // pred_check
      _
    $region31: #{tpu_custom_call.1} parent=1 // pred_check_branch
      %1558 = sbr.rel (0) target = $region33
    $region32: #{tpu_custom_call.1} parent=1 // pred_region
      %s1560 = ssub.s32 128, 128
      %1561 = vsyncadd [#allocation7], %s1560
      %s1563 = sshll.u32 [#allocation6], 4
      %s1564 = int_to_ptr.vmem [resolvable:$true] %s1563
      %1566 = dma.vmem_to_hbm [thread:$0]  %s1564, 128, %s6, [#allocation7]
    $region33: #{tpu_custom_call.1} parent=1 // pred_fallthru
      _
    // Predicated region
    $region34: #{tpu_custom_call.1} parent=1 // pred_check
      _
    $region35: #{tpu_custom_call.1} parent=1 // pred_check_branch
      %1568 = sbr.rel (0) target = $region37
    $region36: #{tpu_custom_call.1} parent=1 // pred_region
      %1569 = dma.done [#allocation4], 256
    $region37: #{tpu_custom_call.1} parent=1 // pred_fallthru
      _
    // Predicated region
    $region38: #{tpu_custom_call.1} parent=1 // pred_check
      _
    $region39: #{tpu_custom_call.1} parent=1 // pred_check_branch
      %1571 = sbr.rel (0) target = $region41
    $region40: #{tpu_custom_call.1} parent=1 // pred_region
      %1572 = dma.done [#allocation7], 128
    $region41: #{tpu_custom_call.1} parent=1 // pred_fallthru
      _
    %1573 = vsyncpa [#allocation3], 1
    %1574 = vsyncpa [#allocation4], 1
    %1575 = vsyncpa [#allocation7], 1

</llo_original>
